<compile_context>
chip_gen: v7x
topology: tpu7x:2x2x1
jax: 0.10.0
libtpu: 0.0.40
codegen_flags: <defaults>
</compile_context>

<pallas_src>
import functools
import math

import jax
import jax.numpy as jnp
from jax.experimental import pallas as pl
from jax.experimental.pallas import tpu as pltpu
from jax.scipy.special import erf


def _layer_norm(x, gamma, beta, eps):
    mu = jnp.mean(x, axis=-1, keepdims=True)
    var = jnp.mean((x - mu) ** 2, axis=-1, keepdims=True)
    return (x - mu) * jax.lax.rsqrt(var + eps) * gamma + beta


def fused_encoder_kernel(x_ref, mask_ref,
                         wqkv_ref, bqkv_ref, wo_ref, bo_ref, g1_ref, be1_ref,
                         w1_ref, b1_ref, w2_ref, b2_ref, g2_ref, be2_ref,
                         wp_ref, bp_ref,
                         seq_ref, pooled_ref,
                         h_ref,
                         *, num_heads, batch, seq_len, eps):
    """One grid step == one GTLayer.  The hidden state (B*S, H) lives in the
    VMEM scratch h_ref across all layers; the pooler runs in the last step."""
    layer = pl.program_id(0)

    @pl.when(layer == 0)
    def _init():
        h_ref[...] = x_ref[...].astype(jnp.float32)

    x = h_ref[...]                       # (B*S, H), f32
    mask = mask_ref[...]                 # (B*S, B*S) additive mask
    BS, H = x.shape
    dh = H // num_heads

    # --- GTSelfAttention: one packed QKV matmul (scale pre-folded into Wq/bq) ---
    qkv = jnp.dot(x, wqkv_ref[0], preferred_element_type=jnp.float32) + bqkv_ref[0]
    wo = wo_ref[0]

    # Per-head attention, accumulated straight into the output projection.
    attn = jnp.zeros((BS, H), jnp.float32)
    for h in range(num_heads):
        qh = qkv[:, h * dh:(h + 1) * dh]
        kh = qkv[:, H + h * dh:H + (h + 1) * dh]
        vh = qkv[:, 2 * H + h * dh:2 * H + (h + 1) * dh]
        s = jnp.dot(qh, kh.T, preferred_element_type=jnp.float32) + mask
        s = s - jnp.max(s, axis=-1, keepdims=True)
        p = jnp.exp(s)
        p = p / jnp.sum(p, axis=-1, keepdims=True)
        ctx = jnp.dot(p, vh, preferred_element_type=jnp.float32)
        attn = attn + jnp.dot(ctx, wo[h * dh:(h + 1) * dh, :],
                              preferred_element_type=jnp.float32)

    # --- GTSelfOutput: dense bias + residual + LayerNorm ---
    attn = _layer_norm(attn + bo_ref[0] + x, g1_ref[0], be1_ref[0], eps)

    # --- GTIntermediate: dense + exact (erf) GELU ---
    inter = jnp.dot(attn, w1_ref[0], preferred_element_type=jnp.float32) + b1_ref[0]
    inter = 0.5 * inter * (1.0 + erf(inter * (1.0 / math.sqrt(2.0))))

    # --- GTOutput: dense + residual + LayerNorm ---
    ffn = jnp.dot(inter, w2_ref[0], preferred_element_type=jnp.float32) + b2_ref[0]
    out = _layer_norm(ffn + attn, g2_ref[0], be2_ref[0], eps)

    h_ref[...] = out

    @pl.when(layer == pl.num_programs(0) - 1)
    def _finalize():
        seq_ref[...] = out.astype(seq_ref.dtype)
        # GTPooler: tanh(h[:, 0, :] @ Wp + bp).  Row b*S of each batch element
        # is selected with a tiny 0/1 matmul (MXU) instead of a strided
        # sublane gather.
        rows = jax.lax.broadcasted_iota(jnp.int32, (batch, BS), 0)
        cols = jax.lax.broadcasted_iota(jnp.int32, (batch, BS), 1)
        sel = (cols == rows * seq_len).astype(jnp.float32)               # (B, B*S)
        x0 = jnp.dot(sel, out, preferred_element_type=jnp.float32)       # (B, H)
        pooled = jnp.tanh(jnp.dot(x0, wp_ref[...],
                                  preferred_element_type=jnp.float32) + bp_ref[...])
        pooled_ref[...] = pooled.astype(pooled_ref.dtype)


def graph_transformer_forward(inputs_embeds, attention_mask, layers, pooler,
                              num_heads, eps=1e-12):
    """Mirrors GraphTransformer.forward: extended mask -> GTEncoder -> GTPooler,
    all inside a single pallas_call."""
    B, S, H = inputs_embeds.shape
    L = len(layers)
    BS = B * S
    dh = H // num_heads
    scale = 1.0 / math.sqrt(dh)

    # Pack & stack per-layer weights.  Wq/bq absorb the 1/sqrt(head_dim) scale;
    # Q|K|V are concatenated so the projection is one (H, 3H) matmul.
    wqkv = jnp.stack([jnp.concatenate([p['wq'] * scale, p['wk'], p['wv']], axis=1)
                      for p in layers])
    bqkv = jnp.stack([jnp.concatenate([p['bq'] * scale, p['bk'], p['bv']], axis=1)
                      for p in layers])

    def stack(name):
        return jnp.stack([p[name] for p in layers])

    wo, bo = stack('wo'), stack('bo')
    g1, be1 = stack('g1'), stack('be1')
    w1, b1 = stack('w1'), stack('b1')
    w2, b2 = stack('w2'), stack('b2')
    g2, be2 = stack('g2'), stack('be2')
    layer_ws = [wqkv, bqkv, wo, bo, g1, be1, w1, b1, w2, b2, g2, be2]

    # get_extended_attention_mask folded with a batch block-diagonal term so
    # attention over the flattened (B*S) row axis stays strictly per-batch.
    ext = (1.0 - attention_mask.astype(jnp.float32)) * -100000000.0       # (B, S)
    bid = jnp.arange(BS, dtype=jnp.int32) // S
    big_mask = jnp.where(bid[:, None] == bid[None, :],
                         ext.reshape(BS)[None, :],
                         jnp.float32(-100000000.0))                       # (BS, BS)

    x_flat = inputs_embeds.reshape(BS, H)

    def per_layer_spec(a):
        nd = a.ndim
        return pl.BlockSpec((1,) + a.shape[1:],
                            lambda l, _nd=nd: (l,) + (0,) * (_nd - 1))

    def whole_spec(a):
        nd = a.ndim
        return pl.BlockSpec(a.shape, lambda l, _nd=nd: (0,) * _nd)

    in_specs = ([whole_spec(x_flat), whole_spec(big_mask)]
                + [per_layer_spec(w) for w in layer_ws]
                + [whole_spec(pooler['w']), whole_spec(pooler['b'])])

    seq_flat, pooled = pl.pallas_call(
        functools.partial(fused_encoder_kernel, num_heads=num_heads,
                          batch=B, seq_len=S, eps=eps),
        grid=(L,),
        in_specs=in_specs,
        out_specs=(pl.BlockSpec((BS, H), lambda l: (0, 0)),
                   pl.BlockSpec((B, H), lambda l: (0, 0))),
        out_shape=(jax.ShapeDtypeStruct((BS, H), inputs_embeds.dtype),
                   jax.ShapeDtypeStruct((B, H), inputs_embeds.dtype)),
        scratch_shapes=[pltpu.VMEM((BS, H), jnp.float32)],
        compiler_params=pltpu.CompilerParams(
            # Layer axis is a sequential carry.  (v7x note: a leading size-2
            # "parallel" batch axis would engage both TensorCores there.)
            dimension_semantics=("arbitrary",)),
    )(x_flat, big_mask, *layer_ws, pooler['w'], pooler['b'])

    return seq_flat.reshape(B, S, H), pooled


def init_params(key, num_layers, H, I, std=0.02):
    """Deterministic synthetic init matching GraphTransformer._init_weights:
    Linear weights ~ N(0, 0.02), Linear biases = 0, LayerNorm weight=1 bias=0."""
    zeros_h = jnp.zeros((1, H), jnp.float32)
    layers = []
    for l in range(num_layers):
        ks = jax.random.split(jax.random.fold_in(key, l), 6)
        layers.append({
            'wq': jax.random.normal(ks[0], (H, H), jnp.float32) * std, 'bq': zeros_h,
            'wk': jax.random.normal(ks[1], (H, H), jnp.float32) * std, 'bk': zeros_h,
            'wv': jax.random.normal(ks[2], (H, H), jnp.float32) * std, 'bv': zeros_h,
            'wo': jax.random.normal(ks[3], (H, H), jnp.float32) * std, 'bo': zeros_h,
            'g1': jnp.ones((1, H), jnp.float32), 'be1': zeros_h,
            'w1': jax.random.normal(ks[4], (H, I), jnp.float32) * std,
            'b1': jnp.zeros((1, I), jnp.float32),
            'w2': jax.random.normal(ks[5], (I, H), jnp.float32) * std, 'b2': zeros_h,
            'g2': jnp.ones((1, H), jnp.float32), 'be2': zeros_h,
        })
    kp = jax.random.fold_in(key, 10_000)
    pooler = {'w': jax.random.normal(kp, (H, H), jnp.float32) * std, 'b': zeros_h}
    return layers, pooler


if __name__ == "__main__":
    # Small config consistent with the module:
    #   hidden_size=32, num_attention_heads=4, intermediate_size=64,
    #   num_hidden_layers=2, max_adj=7 -> seq_len = 1 + max_adj = 8, batch=2.
    B, H, NH, I, L = 2, 32, 4, 64, 2
    MAX_ADJ = 7
    S = 1 + MAX_ADJ

    key = jax.random.PRNGKey(0)
    k_x, k_p = jax.random.split(key)
    inputs_embeds = jax.random.normal(k_x, (B, S, H), jnp.float32)
    attention_mask = jnp.ones((B, S), jnp.float32).at[1, S - 2:].set(0.0)

    layers, pooler = init_params(k_p, L, H, I)
    sequence_output, pooled_output = graph_transformer_forward(
        inputs_embeds, attention_mask, layers, pooler, NH, eps=1e-12)

    jax.block_until_ready((sequence_output, pooled_output))
    assert sequence_output.shape == (B, S, H)
    assert pooled_output.shape == (B, H)
    print("KERNEL_OK")
</pallas_src>

<mosaic_0001>
module attributes {stable_mosaic.version = 11 : i64} {
  func.func @fused_encoder_kernel(%arg0: i32, %arg1: memref<16x32xf32, #tpu.memory_space<vmem>>, %arg2: memref<16x16xf32, #tpu.memory_space<vmem>>, %arg3: memref<1x32x96xf32, #tpu.memory_space<vmem>>, %arg4: memref<1x1x96xf32, #tpu.memory_space<vmem>>, %arg5: memref<1x32x32xf32, #tpu.memory_space<vmem>>, %arg6: memref<1x1x32xf32, #tpu.memory_space<vmem>>, %arg7: memref<1x1x32xf32, #tpu.memory_space<vmem>>, %arg8: memref<1x1x32xf32, #tpu.memory_space<vmem>>, %arg9: memref<1x32x64xf32, #tpu.memory_space<vmem>>, %arg10: memref<1x1x64xf32, #tpu.memory_space<vmem>>, %arg11: memref<1x64x32xf32, #tpu.memory_space<vmem>>, %arg12: memref<1x1x32xf32, #tpu.memory_space<vmem>>, %arg13: memref<1x1x32xf32, #tpu.memory_space<vmem>>, %arg14: memref<1x1x32xf32, #tpu.memory_space<vmem>>, %arg15: memref<32x32xf32, #tpu.memory_space<vmem>>, %arg16: memref<1x32xf32, #tpu.memory_space<vmem>>, %arg17: memref<16x32xf32, #tpu.memory_space<vmem>>, %arg18: memref<2x32xf32, #tpu.memory_space<vmem>>, %arg19: memref<16x32xf32, #tpu.memory_space<vmem>>) attributes {dimension_semantics = [#tpu.dimension_semantics<arbitrary>], iteration_bounds = array<i64: 2>, scalar_prefetch = 0 : i64, scratch_operands = 1 : i64, tpu.core_type = #tpu.core_type<tc>, window_params = [{pipeline_mode = #tpu.pipeline_mode<synchronous>, transform_indices = @transform_0, window_bounds = array<i64: 16, 32>}, {pipeline_mode = #tpu.pipeline_mode<synchronous>, transform_indices = @transform_1, window_bounds = array<i64: 16, 16>}, {transform_indices = @transform_2, window_bounds = array<i64: 1, 32, 96>}, {transform_indices = @transform_3, window_bounds = array<i64: 1, 1, 96>}, {transform_indices = @transform_4, window_bounds = array<i64: 1, 32, 32>}, {transform_indices = @transform_5, window_bounds = array<i64: 1, 1, 32>}, {transform_indices = @transform_6, window_bounds = array<i64: 1, 1, 32>}, {transform_indices = @transform_7, window_bounds = array<i64: 1, 1, 32>}, {transform_indices = @transform_8, window_bounds = array<i64: 1, 32, 64>}, {transform_indices = @transform_9, window_bounds = array<i64: 1, 1, 64>}, {transform_indices = @transform_10, window_bounds = array<i64: 1, 64, 32>}, {transform_indices = @transform_11, window_bounds = array<i64: 1, 1, 32>}, {transform_indices = @transform_12, window_bounds = array<i64: 1, 1, 32>}, {transform_indices = @transform_13, window_bounds = array<i64: 1, 1, 32>}, {pipeline_mode = #tpu.pipeline_mode<synchronous>, transform_indices = @transform_14, window_bounds = array<i64: 32, 32>}, {pipeline_mode = #tpu.pipeline_mode<synchronous>, transform_indices = @transform_15, window_bounds = array<i64: 1, 32>}, {pipeline_mode = #tpu.pipeline_mode<synchronous>, transform_indices = @transform_16, window_bounds = array<i64: 16, 32>}, {pipeline_mode = #tpu.pipeline_mode<synchronous>, transform_indices = @transform_17, window_bounds = array<i64: 2, 32>}]} {
    %c0_i32 = arith.constant 0 : i32
    %0 = arith.cmpi eq, %arg0, %c0_i32 : i32
    %1 = arith.extui %0 : i1 to i32
    %c0_i32_0 = arith.constant 0 : i32
    %2 = arith.cmpi ne, %1, %c0_i32_0 : i32
    scf.if %2 {
      %c0_79 = arith.constant 0 : index
      %c0_80 = arith.constant 0 : index
      %175 = vector.load %arg1[%c0_79, %c0_80] : memref<16x32xf32, #tpu.memory_space<vmem>>, vector<16x32xf32>
      %c0_81 = arith.constant 0 : index
      %c0_82 = arith.constant 0 : index
      %176 = vector.load %arg19[%c0_81, %c0_82] : memref<16x32xf32, #tpu.memory_space<vmem>>, vector<16x32xf32>
      tpu.vector_store %arg19[%c0_81, %c0_82], %175 {strides = array<i32>} : memref<16x32xf32, #tpu.memory_space<vmem>>, vector<16x32xf32>,
    } else {
    }
    %c0 = arith.constant 0 : index
    %c0_1 = arith.constant 0 : index
    %3 = vector.load %arg19[%c0, %c0_1] : memref<16x32xf32, #tpu.memory_space<vmem>>, vector<16x32xf32>
    %c0_2 = arith.constant 0 : index
    %c0_3 = arith.constant 0 : index
    %4 = vector.load %arg2[%c0_2, %c0_3] : memref<16x16xf32, #tpu.memory_space<vmem>>, vector<16x16xf32>
    %c0_4 = arith.constant 0 : index
    %c0_5 = arith.constant 0 : index
    %c0_6 = arith.constant 0 : index
    %5 = vector.load %arg3[%c0_4, %c0_5, %c0_6] : memref<1x32x96xf32, #tpu.memory_space<vmem>>, vector<1x32x96xf32>
    %6 = vector.shape_cast %5 : vector<1x32x96xf32> to vector<32x96xf32>
    %cst = arith.constant dense<0.000000e+00> : vector<16x96xf32>
    %7 = tpu.matmul %3, %6, %cst {dimension_numbers = #tpu.dot_dimension_numbers<[1], [0], [0], [1], [0, 0, 1, 1], [], []>} : vector<16x32xf32>, vector<32x96xf32>, vector<16x96xf32> -> vector<16x96xf32>
    %c0_7 = arith.constant 0 : index
    %c0_8 = arith.constant 0 : index
    %c0_9 = arith.constant 0 : index
    %8 = vector.load %arg4[%c0_7, %c0_8, %c0_9] : memref<1x1x96xf32, #tpu.memory_space<vmem>>, vector<1x1x96xf32>
    %9 = vector.shape_cast %8 : vector<1x1x96xf32> to vector<1x96xf32>
    %10 = vector.broadcast %9 : vector<1x96xf32> to vector<16x96xf32>
    %11 = arith.addf %7, %10 : vector<16x96xf32>
    %c0_10 = arith.constant 0 : index
    %c0_11 = arith.constant 0 : index
    %c0_12 = arith.constant 0 : index
    %12 = vector.load %arg5[%c0_10, %c0_11, %c0_12] : memref<1x32x32xf32, #tpu.memory_space<vmem>>, vector<1x32x32xf32>
    %13 = vector.shape_cast %12 : vector<1x32x32xf32> to vector<32x32xf32>
    %cst_13 = arith.constant 0.000000e+00 : f32
    %14 = vector.broadcast %cst_13 : f32 to vector<16x32xf32>
    %15 = vector.extract_strided_slice %11 {offsets = [0, 0], sizes = [16, 8], strides = [1, 1]} : vector<16x96xf32> to vector<16x8xf32>
    %16 = vector.extract_strided_slice %11 {offsets = [0, 32], sizes = [16, 8], strides = [1, 1]} : vector<16x96xf32> to vector<16x8xf32>
    %17 = vector.extract_strided_slice %11 {offsets = [0, 64], sizes = [16, 8], strides = [1, 1]} : vector<16x96xf32> to vector<16x8xf32>
    %18 = tpu.transpose %16, [1, 0] : vector<16x8xf32> -> vector<8x16xf32>
    %cst_14 = arith.constant dense<0.000000e+00> : vector<16x16xf32>
    %19 = tpu.matmul %15, %18, %cst_14 {dimension_numbers = #tpu.dot_dimension_numbers<[1], [0], [0], [1], [0, 0, 1, 1], [], []>} : vector<16x8xf32>, vector<8x16xf32>, vector<16x16xf32> -> vector<16x16xf32>
    %20 = arith.addf %19, %4 : vector<16x16xf32>
    %cst_15 = arith.constant dense<0xFF800000> : vector<16xf32>
    %21 = vector.multi_reduction <maximumf>, %20, %cst_15 [1] : vector<16x16xf32> to vector<16xf32>
    %22 = vector.shape_cast %21 : vector<16xf32> to vector<16x1xf32>
    %23 = vector.broadcast %22 : vector<16x1xf32> to vector<16x16xf32>
    %24 = arith.subf %20, %23 : vector<16x16xf32>
    %25 = math.exp %24 : vector<16x16xf32>
    %cst_16 = arith.constant dense<0.000000e+00> : vector<16xf32>
    %26 = vector.multi_reduction <add>, %25, %cst_16 [1] : vector<16x16xf32> to vector<16xf32>
    %27 = vector.shape_cast %26 : vector<16xf32> to vector<16x1xf32>
    %28 = vector.broadcast %27 : vector<16x1xf32> to vector<16x16xf32>
    %29 = arith.divf %25, %28 : vector<16x16xf32>
    %cst_17 = arith.constant dense<0.000000e+00> : vector<16x8xf32>
    %30 = tpu.matmul %29, %17, %cst_17 {dimension_numbers = #tpu.dot_dimension_numbers<[1], [0], [0], [1], [0, 0, 1, 1], [], []>} : vector<16x16xf32>, vector<16x8xf32>, vector<16x8xf32> -> vector<16x8xf32>
    %31 = vector.extract_strided_slice %13 {offsets = [0, 0], sizes = [8, 32], strides = [1, 1]} : vector<32x32xf32> to vector<8x32xf32>
    %cst_18 = arith.constant dense<0.000000e+00> : vector<16x32xf32>
    %32 = tpu.matmul %30, %31, %cst_18 {dimension_numbers = #tpu.dot_dimension_numbers<[1], [0], [0], [1], [0, 0, 1, 1], [], []>} : vector<16x8xf32>, vector<8x32xf32>, vector<16x32xf32> -> vector<16x32xf32>
    %33 = arith.addf %14, %32 : vector<16x32xf32>
    %34 = vector.extract_strided_slice %11 {offsets = [0, 8], sizes = [16, 8], strides = [1, 1]} : vector<16x96xf32> to vector<16x8xf32>
    %35 = vector.extract_strided_slice %11 {offsets = [0, 40], sizes = [16, 8], strides = [1, 1]} : vector<16x96xf32> to vector<16x8xf32>
    %36 = vector.extract_strided_slice %11 {offsets = [0, 72], sizes = [16, 8], strides = [1, 1]} : vector<16x96xf32> to vector<16x8xf32>
    %37 = tpu.transpose %35, [1, 0] : vector<16x8xf32> -> vector<8x16xf32>
    %cst_19 = arith.constant dense<0.000000e+00> : vector<16x16xf32>
    %38 = tpu.matmul %34, %37, %cst_19 {dimension_numbers = #tpu.dot_dimension_numbers<[1], [0], [0], [1], [0, 0, 1, 1], [], []>} : vector<16x8xf32>, vector<8x16xf32>, vector<16x16xf32> -> vector<16x16xf32>
    %39 = arith.addf %38, %4 : vector<16x16xf32>
    %cst_20 = arith.constant dense<0xFF800000> : vector<16xf32>
    %40 = vector.multi_reduction <maximumf>, %39, %cst_20 [1] : vector<16x16xf32> to vector<16xf32>
    %41 = vector.shape_cast %40 : vector<16xf32> to vector<16x1xf32>
    %42 = vector.broadcast %41 : vector<16x1xf32> to vector<16x16xf32>
    %43 = arith.subf %39, %42 : vector<16x16xf32>
    %44 = math.exp %43 : vector<16x16xf32>
    %cst_21 = arith.constant dense<0.000000e+00> : vector<16xf32>
    %45 = vector.multi_reduction <add>, %44, %cst_21 [1] : vector<16x16xf32> to vector<16xf32>
    %46 = vector.shape_cast %45 : vector<16xf32> to vector<16x1xf32>
    %47 = vector.broadcast %46 : vector<16x1xf32> to vector<16x16xf32>
    %48 = arith.divf %44, %47 : vector<16x16xf32>
    %cst_22 = arith.constant dense<0.000000e+00> : vector<16x8xf32>
    %49 = tpu.matmul %48, %36, %cst_22 {dimension_numbers = #tpu.dot_dimension_numbers<[1], [0], [0], [1], [0, 0, 1, 1], [], []>} : vector<16x16xf32>, vector<16x8xf32>, vector<16x8xf32> -> vector<16x8xf32>
    %50 = vector.extract_strided_slice %13 {offsets = [8, 0], sizes = [8, 32], strides = [1, 1]} : vector<32x32xf32> to vector<8x32xf32>
    %cst_23 = arith.constant dense<0.000000e+00> : vector<16x32xf32>
    %51 = tpu.matmul %49, %50, %cst_23 {dimension_numbers = #tpu.dot_dimension_numbers<[1], [0], [0], [1], [0, 0, 1, 1], [], []>} : vector<16x8xf32>, vector<8x32xf32>, vector<16x32xf32> -> vector<16x32xf32>
    %52 = arith.addf %33, %51 : vector<16x32xf32>
    %53 = vector.extract_strided_slice %11 {offsets = [0, 16], sizes = [16, 8], strides = [1, 1]} : vector<16x96xf32> to vector<16x8xf32>
    %54 = vector.extract_strided_slice %11 {offsets = [0, 48], sizes = [16, 8], strides = [1, 1]} : vector<16x96xf32> to vector<16x8xf32>
    %55 = vector.extract_strided_slice %11 {offsets = [0, 80], sizes = [16, 8], strides = [1, 1]} : vector<16x96xf32> to vector<16x8xf32>
    %56 = tpu.transpose %54, [1, 0] : vector<16x8xf32> -> vector<8x16xf32>
    %cst_24 = arith.constant dense<0.000000e+00> : vector<16x16xf32>
    %57 = tpu.matmul %53, %56, %cst_24 {dimension_numbers = #tpu.dot_dimension_numbers<[1], [0], [0], [1], [0, 0, 1, 1], [], []>} : vector<16x8xf32>, vector<8x16xf32>, vector<16x16xf32> -> vector<16x16xf32>
    %58 = arith.addf %57, %4 : vector<16x16xf32>
    %cst_25 = arith.constant dense<0xFF800000> : vector<16xf32>
    %59 = vector.multi_reduction <maximumf>, %58, %cst_25 [1] : vector<16x16xf32> to vector<16xf32>
    %60 = vector.shape_cast %59 : vector<16xf32> to vector<16x1xf32>
    %61 = vector.broadcast %60 : vector<16x1xf32> to vector<16x16xf32>
    %62 = arith.subf %58, %61 : vector<16x16xf32>
    %63 = math.exp %62 : vector<16x16xf32>
    %cst_26 = arith.constant dense<0.000000e+00> : vector<16xf32>
    %64 = vector.multi_reduction <add>, %63, %cst_26 [1] : vector<16x16xf32> to vector<16xf32>
    %65 = vector.shape_cast %64 : vector<16xf32> to vector<16x1xf32>
    %66 = vector.broadcast %65 : vector<16x1xf32> to vector<16x16xf32>
    %67 = arith.divf %63, %66 : vector<16x16xf32>
    %cst_27 = arith.constant dense<0.000000e+00> : vector<16x8xf32>
    %68 = tpu.matmul %67, %55, %cst_27 {dimension_numbers = #tpu.dot_dimension_numbers<[1], [0], [0], [1], [0, 0, 1, 1], [], []>} : vector<16x16xf32>, vector<16x8xf32>, vector<16x8xf32> -> vector<16x8xf32>
    %69 = vector.extract_strided_slice %13 {offsets = [16, 0], sizes = [8, 32], strides = [1, 1]} : vector<32x32xf32> to vector<8x32xf32>
    %cst_28 = arith.constant dense<0.000000e+00> : vector<16x32xf32>
    %70 = tpu.matmul %68, %69, %cst_28 {dimension_numbers = #tpu.dot_dimension_numbers<[1], [0], [0], [1], [0, 0, 1, 1], [], []>} : vector<16x8xf32>, vector<8x32xf32>, vector<16x32xf32> -> vector<16x32xf32>
    %71 = arith.addf %52, %70 : vector<16x32xf32>
    %72 = vector.extract_strided_slice %11 {offsets = [0, 24], sizes = [16, 8], strides = [1, 1]} : vector<16x96xf32> to vector<16x8xf32>
    %73 = vector.extract_strided_slice %11 {offsets = [0, 56], sizes = [16, 8], strides = [1, 1]} : vector<16x96xf32> to vector<16x8xf32>
    %74 = vector.extract_strided_slice %11 {offsets = [0, 88], sizes = [16, 8], strides = [1, 1]} : vector<16x96xf32> to vector<16x8xf32>
    %75 = tpu.transpose %73, [1, 0] : vector<16x8xf32> -> vector<8x16xf32>
    %cst_29 = arith.constant dense<0.000000e+00> : vector<16x16xf32>
    %76 = tpu.matmul %72, %75, %cst_29 {dimension_numbers = #tpu.dot_dimension_numbers<[1], [0], [0], [1], [0, 0, 1, 1], [], []>} : vector<16x8xf32>, vector<8x16xf32>, vector<16x16xf32> -> vector<16x16xf32>
    %77 = arith.addf %76, %4 : vector<16x16xf32>
    %cst_30 = arith.constant dense<0xFF800000> : vector<16xf32>
    %78 = vector.multi_reduction <maximumf>, %77, %cst_30 [1] : vector<16x16xf32> to vector<16xf32>
    %79 = vector.shape_cast %78 : vector<16xf32> to vector<16x1xf32>
    %80 = vector.broadcast %79 : vector<16x1xf32> to vector<16x16xf32>
    %81 = arith.subf %77, %80 : vector<16x16xf32>
    %82 = math.exp %81 : vector<16x16xf32>
    %cst_31 = arith.constant dense<0.000000e+00> : vector<16xf32>
    %83 = vector.multi_reduction <add>, %82, %cst_31 [1] : vector<16x16xf32> to vector<16xf32>
    %84 = vector.shape_cast %83 : vector<16xf32> to vector<16x1xf32>
    %85 = vector.broadcast %84 : vector<16x1xf32> to vector<16x16xf32>
    %86 = arith.divf %82, %85 : vector<16x16xf32>
    %cst_32 = arith.constant dense<0.000000e+00> : vector<16x8xf32>
    %87 = tpu.matmul %86, %74, %cst_32 {dimension_numbers = #tpu.dot_dimension_numbers<[1], [0], [0], [1], [0, 0, 1, 1], [], []>} : vector<16x16xf32>, vector<16x8xf32>, vector<16x8xf32> -> vector<16x8xf32>
    %88 = vector.extract_strided_slice %13 {offsets = [24, 0], sizes = [8, 32], strides = [1, 1]} : vector<32x32xf32> to vector<8x32xf32>
    %cst_33 = arith.constant dense<0.000000e+00> : vector<16x32xf32>
    %89 = tpu.matmul %87, %88, %cst_33 {dimension_numbers = #tpu.dot_dimension_numbers<[1], [0], [0], [1], [0, 0, 1, 1], [], []>} : vector<16x8xf32>, vector<8x32xf32>, vector<16x32xf32> -> vector<16x32xf32>
    %90 = arith.addf %71, %89 : vector<16x32xf32>
    %c0_34 = arith.constant 0 : index
    %c0_35 = arith.constant 0 : index
    %c0_36 = arith.constant 0 : index
    %91 = vector.load %arg6[%c0_34, %c0_35, %c0_36] : memref<1x1x32xf32, #tpu.memory_space<vmem>>, vector<1x1x32xf32>
    %92 = vector.shape_cast %91 : vector<1x1x32xf32> to vector<1x32xf32>
    %93 = vector.broadcast %92 : vector<1x32xf32> to vector<16x32xf32>
    %94 = arith.addf %90, %93 : vector<16x32xf32>
    %95 = arith.addf %94, %3 : vector<16x32xf32>
    %c0_37 = arith.constant 0 : index
    %c0_38 = arith.constant 0 : index
    %c0_39 = arith.constant 0 : index
    %96 = vector.load %arg7[%c0_37, %c0_38, %c0_39] : memref<1x1x32xf32, #tpu.memory_space<vmem>>, vector<1x1x32xf32>
    %97 = vector.shape_cast %96 : vector<1x1x32xf32> to vector<1x32xf32>
    %c0_40 = arith.constant 0 : index
    %c0_41 = arith.constant 0 : index
    %c0_42 = arith.constant 0 : index
    %98 = vector.load %arg8[%c0_40, %c0_41, %c0_42] : memref<1x1x32xf32, #tpu.memory_space<vmem>>, vector<1x1x32xf32>
    %99 = vector.shape_cast %98 : vector<1x1x32xf32> to vector<1x32xf32>
    %cst_43 = arith.constant dense<0.000000e+00> : vector<16xf32>
    %100 = vector.multi_reduction <add>, %95, %cst_43 [1] : vector<16x32xf32> to vector<16xf32>
    %101 = vector.shape_cast %100 : vector<16xf32> to vector<16x1xf32>
    %cst_44 = arith.constant 3.200000e+01 : f32
    %102 = vector.broadcast %cst_44 : f32 to vector<16x1xf32>
    %103 = arith.divf %101, %102 : vector<16x1xf32>
    %104 = vector.broadcast %103 : vector<16x1xf32> to vector<16x32xf32>
    %105 = arith.subf %95, %104 : vector<16x32xf32>
    %106 = arith.mulf %105, %105 : vector<16x32xf32>
    %cst_45 = arith.constant dense<0.000000e+00> : vector<16xf32>
    %107 = vector.multi_reduction <add>, %106, %cst_45 [1] : vector<16x32xf32> to vector<16xf32>
    %108 = vector.shape_cast %107 : vector<16xf32> to vector<16x1xf32>
    %cst_46 = arith.constant 3.200000e+01 : f32
    %109 = vector.broadcast %cst_46 : f32 to vector<16x1xf32>
    %110 = arith.divf %108, %109 : vector<16x1xf32>
    %111 = vector.broadcast %103 : vector<16x1xf32> to vector<16x32xf32>
    %112 = arith.subf %95, %111 : vector<16x32xf32>
    %cst_47 = arith.constant 9.99999996E-13 : f32
    %113 = vector.broadcast %cst_47 : f32 to vector<16x1xf32>
    %114 = arith.addf %110, %113 : vector<16x1xf32>
    %115 = math.rsqrt %114 : vector<16x1xf32>
    %116 = vector.broadcast %115 : vector<16x1xf32> to vector<16x32xf32>
    %117 = arith.mulf %112, %116 : vector<16x32xf32>
    %118 = vector.broadcast %97 : vector<1x32xf32> to vector<16x32xf32>
    %119 = arith.mulf %117, %118 : vector<16x32xf32>
    %120 = vector.broadcast %99 : vector<1x32xf32> to vector<16x32xf32>
    %121 = arith.addf %119, %120 : vector<16x32xf32>
    %c0_48 = arith.constant 0 : index
    %c0_49 = arith.constant 0 : index
    %c0_50 = arith.constant 0 : index
    %122 = vector.load %arg9[%c0_48, %c0_49, %c0_50] : memref<1x32x64xf32, #tpu.memory_space<vmem>>, vector<1x32x64xf32>
    %123 = vector.shape_cast %122 : vector<1x32x64xf32> to vector<32x64xf32>
    %cst_51 = arith.constant dense<0.000000e+00> : vector<16x64xf32>
    %124 = tpu.matmul %121, %123, %cst_51 {dimension_numbers = #tpu.dot_dimension_numbers<[1], [0], [0], [1], [0, 0, 1, 1], [], []>} : vector<16x32xf32>, vector<32x64xf32>, vector<16x64xf32> -> vector<16x64xf32>
    %c0_52 = arith.constant 0 : index
    %c0_53 = arith.constant 0 : index
    %c0_54 = arith.constant 0 : index
    %125 = vector.load %arg10[%c0_52, %c0_53, %c0_54] : memref<1x1x64xf32, #tpu.memory_space<vmem>>, vector<1x1x64xf32>
    %126 = vector.shape_cast %125 : vector<1x1x64xf32> to vector<1x64xf32>
    %127 = vector.broadcast %126 : vector<1x64xf32> to vector<16x64xf32>
    %128 = arith.addf %124, %127 : vector<16x64xf32>
    %cst_55 = arith.constant 5.000000e-01 : f32
    %129 = vector.broadcast %cst_55 : f32 to vector<16x64xf32>
    %130 = arith.mulf %129, %128 : vector<16x64xf32>
    %cst_56 = arith.constant 0.707106769 : f32
    %131 = vector.broadcast %cst_56 : f32 to vector<16x64xf32>
    %132 = arith.mulf %128, %131 : vector<16x64xf32>
    %133 = math.erf %132 : vector<16x64xf32>
    %cst_57 = arith.constant 1.000000e+00 : f32
    %134 = vector.broadcast %cst_57 : f32 to vector<16x64xf32>
    %135 = arith.addf %134, %133 : vector<16x64xf32>
    %136 = arith.mulf %130, %135 : vector<16x64xf32>
    %c0_58 = arith.constant 0 : index
    %c0_59 = arith.constant 0 : index
    %c0_60 = arith.constant 0 : index
    %137 = vector.load %arg11[%c0_58, %c0_59, %c0_60] : memref<1x64x32xf32, #tpu.memory_space<vmem>>, vector<1x64x32xf32>
    %138 = vector.shape_cast %137 : vector<1x64x32xf32> to vector<64x32xf32>
    %cst_61 = arith.constant dense<0.000000e+00> : vector<16x32xf32>
    %139 = tpu.matmul %136, %138, %cst_61 {dimension_numbers = #tpu.dot_dimension_numbers<[1], [0], [0], [1], [0, 0, 1, 1], [], []>} : vector<16x64xf32>, vector<64x32xf32>, vector<16x32xf32> -> vector<16x32xf32>
    %c0_62 = arith.constant 0 : index
    %c0_63 = arith.constant 0 : index
    %c0_64 = arith.constant 0 : index
    %140 = vector.load %arg12[%c0_62, %c0_63, %c0_64] : memref<1x1x32xf32, #tpu.memory_space<vmem>>, vector<1x1x32xf32>
    %141 = vector.shape_cast %140 : vector<1x1x32xf32> to vector<1x32xf32>
    %142 = vector.broadcast %141 : vector<1x32xf32> to vector<16x32xf32>
    %143 = arith.addf %139, %142 : vector<16x32xf32>
    %144 = arith.addf %143, %121 : vector<16x32xf32>
    %c0_65 = arith.constant 0 : index
    %c0_66 = arith.constant 0 : index
    %c0_67 = arith.constant 0 : index
    %145 = vector.load %arg13[%c0_65, %c0_66, %c0_67] : memref<1x1x32xf32, #tpu.memory_space<vmem>>, vector<1x1x32xf32>
    %146 = vector.shape_cast %145 : vector<1x1x32xf32> to vector<1x32xf32>
    %c0_68 = arith.constant 0 : index
    %c0_69 = arith.constant 0 : index
    %c0_70 = arith.constant 0 : index
    %147 = vector.load %arg14[%c0_68, %c0_69, %c0_70] : memref<1x1x32xf32, #tpu.memory_space<vmem>>, vector<1x1x32xf32>
    %148 = vector.shape_cast %147 : vector<1x1x32xf32> to vector<1x32xf32>
    %cst_71 = arith.constant dense<0.000000e+00> : vector<16xf32>
    %149 = vector.multi_reduction <add>, %144, %cst_71 [1] : vector<16x32xf32> to vector<16xf32>
    %150 = vector.shape_cast %149 : vector<16xf32> to vector<16x1xf32>
    %cst_72 = arith.constant 3.200000e+01 : f32
    %151 = vector.broadcast %cst_72 : f32 to vector<16x1xf32>
    %152 = arith.divf %150, %151 : vector<16x1xf32>
    %153 = vector.broadcast %152 : vector<16x1xf32> to vector<16x32xf32>
    %154 = arith.subf %144, %153 : vector<16x32xf32>
    %155 = arith.mulf %154, %154 : vector<16x32xf32>
    %cst_73 = arith.constant dense<0.000000e+00> : vector<16xf32>
    %156 = vector.multi_reduction <add>, %155, %cst_73 [1] : vector<16x32xf32> to vector<16xf32>
    %157 = vector.shape_cast %156 : vector<16xf32> to vector<16x1xf32>
    %cst_74 = arith.constant 3.200000e+01 : f32
    %158 = vector.broadcast %cst_74 : f32 to vector<16x1xf32>
    %159 = arith.divf %157, %158 : vector<16x1xf32>
    %160 = vector.broadcast %152 : vector<16x1xf32> to vector<16x32xf32>
    %161 = arith.subf %144, %160 : vector<16x32xf32>
    %cst_75 = arith.constant 9.99999996E-13 : f32
    %162 = vector.broadcast %cst_75 : f32 to vector<16x1xf32>
    %163 = arith.addf %159, %162 : vector<16x1xf32>
    %164 = math.rsqrt %163 : vector<16x1xf32>
    %165 = vector.broadcast %164 : vector<16x1xf32> to vector<16x32xf32>
    %166 = arith.mulf %161, %165 : vector<16x32xf32>
    %167 = vector.broadcast %146 : vector<1x32xf32> to vector<16x32xf32>
    %168 = arith.mulf %166, %167 : vector<16x32xf32>
    %169 = vector.broadcast %148 : vector<1x32xf32> to vector<16x32xf32>
    %170 = arith.addf %168, %169 : vector<16x32xf32>
    %c0_76 = arith.constant 0 : index
    %c0_77 = arith.constant 0 : index
    %171 = vector.load %arg19[%c0_76, %c0_77] : memref<16x32xf32, #tpu.memory_space<vmem>>, vector<16x32xf32>
    tpu.vector_store %arg19[%c0_76, %c0_77], %170 {strides = array<i32>} : memref<16x32xf32, #tpu.memory_space<vmem>>, vector<16x32xf32>,
    %c1_i32 = arith.constant 1 : i32
    %172 = arith.cmpi eq, %arg0, %c1_i32 : i32
    %173 = arith.extui %172 : i1 to i32
    %c0_i32_78 = arith.constant 0 : i32
    %174 = arith.cmpi ne, %173, %c0_i32_78 : i32
    scf.if %174 {
      %c0_79 = arith.constant 0 : index
      %c0_80 = arith.constant 0 : index
      %175 = vector.load %arg17[%c0_79, %c0_80] : memref<16x32xf32, #tpu.memory_space<vmem>>, vector<16x32xf32>
      tpu.vector_store %arg17[%c0_79, %c0_80], %170 {strides = array<i32>} : memref<16x32xf32, #tpu.memory_space<vmem>>, vector<16x32xf32>,
      %176 = tpu.iota {dimensions = array<i32: 0>} : vector<2x16xi32>
      %177 = tpu.iota {dimensions = array<i32: 1>} : vector<2x16xi32>
      %c8_i32 = arith.constant 8 : i32
      %178 = vector.broadcast %c8_i32 : i32 to vector<2x16xi32>
      %179 = arith.muli %176, %178 : vector<2x16xi32>
      %180 = arith.cmpi eq, %177, %179 : vector<2x16xi32>
      %181 = arith.extui %180 : vector<2x16xi1> to vector<2x16xi32>
      %182 = arith.sitofp %181 : vector<2x16xi32> to vector<2x16xf32>
      %cst_81 = arith.constant dense<0.000000e+00> : vector<2x32xf32>
      %183 = tpu.matmul %182, %170, %cst_81 {dimension_numbers = #tpu.dot_dimension_numbers<[1], [0], [0], [1], [0, 0, 1, 1], [], []>} : vector<2x16xf32>, vector<16x32xf32>, vector<2x32xf32> -> vector<2x32xf32>
      %c0_82 = arith.constant 0 : index
      %c0_83 = arith.constant 0 : index
      %184 = vector.load %arg15[%c0_82, %c0_83] : memref<32x32xf32, #tpu.memory_space<vmem>>, vector<32x32xf32>
      %cst_84 = arith.constant dense<0.000000e+00> : vector<2x32xf32>
      %185 = tpu.matmul %183, %184, %cst_84 {dimension_numbers = #tpu.dot_dimension_numbers<[1], [0], [0], [1], [0, 0, 1, 1], [], []>} : vector<2x32xf32>, vector<32x32xf32>, vector<2x32xf32> -> vector<2x32xf32>
      %c0_85 = arith.constant 0 : index
      %c0_86 = arith.constant 0 : index
      %186 = vector.load %arg16[%c0_85, %c0_86] : memref<1x32xf32, #tpu.memory_space<vmem>>, vector<1x32xf32>
      %187 = vector.broadcast %186 : vector<1x32xf32> to vector<2x32xf32>
      %188 = arith.addf %185, %187 : vector<2x32xf32>
      %189 = math.tanh %188 : vector<2x32xf32>
      %c0_87 = arith.constant 0 : index
      %c0_88 = arith.constant 0 : index
      %190 = vector.load %arg18[%c0_87, %c0_88] : memref<2x32xf32, #tpu.memory_space<vmem>>, vector<2x32xf32>
      tpu.vector_store %arg18[%c0_87, %c0_88], %189 {strides = array<i32>} : memref<2x32xf32, #tpu.memory_space<vmem>>, vector<2x32xf32>,
    } else {
    }
    return
  }
  func.func @transform_0(%arg0: i32) -> (i32, i32) {
    %c0_i32 = arith.constant 0 : i32
    %c0_i32_0 = arith.constant 0 : i32
    %c0_i32_1 = arith.constant 0 : i32
    return %c0_i32, %c0_i32_0 : i32, i32
  }
  func.func @transform_1(%arg0: i32) -> (i32, i32) {
    %c0_i32 = arith.constant 0 : i32
    %c0_i32_0 = arith.constant 0 : i32
    %c0_i32_1 = arith.constant 0 : i32
    return %c0_i32, %c0_i32_0 : i32, i32
  }
  func.func @transform_2(%arg0: i32) -> (i32, i32, i32) {
    %c0_i32 = arith.constant 0 : i32
    %c0_i32_0 = arith.constant 0 : i32
    %c0_i32_1 = arith.constant 0 : i32
    return %arg0, %c0_i32, %c0_i32_0 : i32, i32, i32
  }
  func.func @transform_3(%arg0: i32) -> (i32, i32, i32) {
    %c0_i32 = arith.constant 0 : i32
    %c0_i32_0 = arith.constant 0 : i32
    %c0_i32_1 = arith.constant 0 : i32
    return %arg0, %c0_i32, %c0_i32_0 : i32, i32, i32
  }
  func.func @transform_4(%arg0: i32) -> (i32, i32, i32) {
    %c0_i32 = arith.constant 0 : i32
    %c0_i32_0 = arith.constant 0 : i32
    %c0_i32_1 = arith.constant 0 : i32
    return %arg0, %c0_i32, %c0_i32_0 : i32, i32, i32
  }
  func.func @transform_5(%arg0: i32) -> (i32, i32, i32) {
    %c0_i32 = arith.constant 0 : i32
    %c0_i32_0 = arith.constant 0 : i32
    %c0_i32_1 = arith.constant 0 : i32
    return %arg0, %c0_i32, %c0_i32_0 : i32, i32, i32
  }
  func.func @transform_6(%arg0: i32) -> (i32, i32, i32) {
    %c0_i32 = arith.constant 0 : i32
    %c0_i32_0 = arith.constant 0 : i32
    %c0_i32_1 = arith.constant 0 : i32
    return %arg0, %c0_i32, %c0_i32_0 : i32, i32, i32
  }
  func.func @transform_7(%arg0: i32) -> (i32, i32, i32) {
    %c0_i32 = arith.constant 0 : i32
    %c0_i32_0 = arith.constant 0 : i32
    %c0_i32_1 = arith.constant 0 : i32
    return %arg0, %c0_i32, %c0_i32_0 : i32, i32, i32
  }
  func.func @transform_8(%arg0: i32) -> (i32, i32, i32) {
    %c0_i32 = arith.constant 0 : i32
    %c0_i32_0 = arith.constant 0 : i32
    %c0_i32_1 = arith.constant 0 : i32
    return %arg0, %c0_i32, %c0_i32_0 : i32, i32, i32
  }
  func.func @transform_9(%arg0: i32) -> (i32, i32, i32) {
    %c0_i32 = arith.constant 0 : i32
    %c0_i32_0 = arith.constant 0 : i32
    %c0_i32_1 = arith.constant 0 : i32
    return %arg0, %c0_i32, %c0_i32_0 : i32, i32, i32
  }
  func.func @transform_10(%arg0: i32) -> (i32, i32, i32) {
    %c0_i32 = arith.constant 0 : i32
    %c0_i32_0 = arith.constant 0 : i32
    %c0_i32_1 = arith.constant 0 : i32
    return %arg0, %c0_i32, %c0_i32_0 : i32, i32, i32
  }
  func.func @transform_11(%arg0: i32) -> (i32, i32, i32) {
    %c0_i32 = arith.constant 0 : i32
    %c0_i32_0 = arith.constant 0 : i32
    %c0_i32_1 = arith.constant 0 : i32
    return %arg0, %c0_i32, %c0_i32_0 : i32, i32, i32
  }
  func.func @transform_12(%arg0: i32) -> (i32, i32, i32) {
    %c0_i32 = arith.constant 0 : i32
    %c0_i32_0 = arith.constant 0 : i32
    %c0_i32_1 = arith.constant 0 : i32
    return %arg0, %c0_i32, %c0_i32_0 : i32, i32, i32
  }
  func.func @transform_13(%arg0: i32) -> (i32, i32, i32) {
    %c0_i32 = arith.constant 0 : i32
    %c0_i32_0 = arith.constant 0 : i32
    %c0_i32_1 = arith.constant 0 : i32
    return %arg0, %c0_i32, %c0_i32_0 : i32, i32, i32
  }
  func.func @transform_14(%arg0: i32) -> (i32, i32) {
    %c0_i32 = arith.constant 0 : i32
    %c0_i32_0 = arith.constant 0 : i32
    %c0_i32_1 = arith.constant 0 : i32
    return %c0_i32, %c0_i32_0 : i32, i32
  }
  func.func @transform_15(%arg0: i32) -> (i32, i32) {
    %c0_i32 = arith.constant 0 : i32
    %c0_i32_0 = arith.constant 0 : i32
    %c0_i32_1 = arith.constant 0 : i32
    return %c0_i32, %c0_i32_0 : i32, i32
  }
  func.func @transform_16(%arg0: i32) -> (i32, i32) {
    %c0_i32 = arith.constant 0 : i32
    %c0_i32_0 = arith.constant 0 : i32
    %c0_i32_1 = arith.constant 0 : i32
    return %c0_i32, %c0_i32_0 : i32, i32
  }
  func.func @transform_17(%arg0: i32) -> (i32, i32) {
    %c0_i32 = arith.constant 0 : i32
    %c0_i32_0 = arith.constant 0 : i32
    %c0_i32_1 = arith.constant 0 : i32
    return %c0_i32, %c0_i32_0 : i32, i32
  }
}

</mosaic_0001>

<llo_original>
// kernel: tpu_custom_call.1
$region0: #{tpu_custom_call.1}
  #allocation0 [shape = 'u32[]', space=smem, size = 0x4, offset = 0x4, fixed_abs, tag = 'smem constant byte address 0x4 - core index']
  #allocation1 [shape = 'u32[144,128]{1,0:T(1,128)}', space=vmem, size = 0x12000, scoped, tag = 'internal scratch']
  #allocation2 [shape = 'f32[16,32]{1,0:T(8,128)}', space=vmem, size = 0x2000, scoped, tag = 'scratch operand']
  %s0 = inlined_call_operand.hbm [shape: f32[16,32], index: 0, kind: input, shape index: {}]
  %s1 = inlined_call_operand.hbm [shape: f32[16,16], index: 1, kind: input, shape index: {}]
  %s2 = inlined_call_operand.vmem [shape: f32[2,32,96], index: 2, kind: input, shape index: {}]
  %s3 = inlined_call_operand.vmem [shape: f32[2,1,96], index: 3, kind: input, shape index: {}]
  %s4 = inlined_call_operand.vmem [shape: f32[2,32,32], index: 4, kind: input, shape index: {}]
  %s5 = inlined_call_operand.hbm [shape: f32[2,1,32], index: 5, kind: input, shape index: {}]
  %s6 = inlined_call_operand.hbm [shape: f32[2,1,32], index: 6, kind: input, shape index: {}]
  %s7 = inlined_call_operand.hbm [shape: f32[2,1,32], index: 7, kind: input, shape index: {}]
  %s8 = inlined_call_operand.vmem [shape: f32[2,32,64], index: 8, kind: input, shape index: {}]
  %s9 = inlined_call_operand.hbm [shape: f32[2,1,64], index: 9, kind: input, shape index: {}]
  %s10 = inlined_call_operand.vmem [shape: f32[2,64,32], index: 10, kind: input, shape index: {}]
  %s11 = inlined_call_operand.vmem [shape: f32[2,1,32], index: 11, kind: input, shape index: {}]
  %s12 = inlined_call_operand.vmem [shape: f32[2,1,32], index: 12, kind: input, shape index: {}]
  %s13 = inlined_call_operand.vmem [shape: f32[2,1,32], index: 13, kind: input, shape index: {}]
  %s14 = inlined_call_operand.vmem [shape: f32[32,32], index: 14, kind: input, shape index: {}]
  %s15 = inlined_call_operand.vmem [shape: f32[1,32], index: 15, kind: input, shape index: {}]
  %s16 = inlined_call_operand.hbm [shape: f32[16,32], index: 16, kind: output, shape index: {0}]
  %s17 = inlined_call_operand.hbm [shape: f32[2,32], index: 17, kind: output, shape index: {1}]
  %18 = xla_tuple %s16, %s17
  %s19 = sld [smem:[#allocation0]]
  $region137: #{tpu_custom_call.1} parent=0
    _
  %s21 = ssub.s32 1, %s19
  %s22 = scalar_select 0, %s21, %s19
  $region1: #{tpu_custom_call.1} parent=0
    #allocation3 [shape = 'u8[8192]{0}', space=vmem, size = 0x2000, scoped, tag = 'input window, operand 0, single buffered']
    #allocation4 [shape = 's32[2]{0}', space=sflag, size = 0x8, scoped, tag = 'scoped memory for tpu_custom_call.1']
    #allocation5 [shape = 's32[2]{0}', space=sflag, size = 0x8, scoped, tag = 'scoped memory for tpu_custom_call.1']
    #allocation6 [shape = 'u8[8192]{0}', space=vmem, size = 0x2000, scoped, tag = 'input window, operand 1, single buffered']
    #allocation7 [shape = 's32[1]{0}', space=sflag, size = 0x4, scoped, tag = 'scoped memory for tpu_custom_call.1']
    #allocation8 [shape = 'u8[1024]{0}', space=vmem, size = 0x400, scoped, tag = 'input window, operand 5']
    #allocation9 [shape = 'u8[1024]{0}', space=vmem, size = 0x400, scoped, tag = 'input window, operand 6']
    #allocation10 [shape = 'u8[1024]{0}', space=vmem, size = 0x400, scoped, tag = 'input window, operand 7']
    #allocation11 [shape = 'u8[1024]{0}', space=vmem, size = 0x400, scoped, tag = 'input window, operand 9']
    #allocation12 [shape = 'u8[8192]{0}', space=vmem, size = 0x2000, scoped, tag = 'output window, operand 0, single buffered']
    #allocation13 [shape = 'u8[1024]{0}', space=vmem, size = 0x400, scoped, tag = 'output window, operand 1, single buffered']
    #allocation14 [shape = 's32[1]{0}', space=sflag, size = 0x4, scoped, tag = 'scoped memory for tpu_custom_call.1']
    %23 = vsyncpa [#allocation4], 0
    %24 = vsyncpa [#allocation7], 0
    %25 = vsyncpa [#allocation5], 0
    %26 = vsyncpa [#allocation14], 0
    loop: start=0, step=1, limit=4
    $region2: #{tpu_custom_call.1} parent=1 // loop_pre_header
      _
    $region3: #{tpu_custom_call.1} parent=1 // loop_header
      %s28 = sphi 0, %s32
      %p29 = scmp.ge.s32.totalorder %s28, 4
      %s36 = sphi 0, %s36
      %s38 = sphi 0, %s36
      %s39 = sphi 0, %s38
      %s53 = sphi 0, %s39
      %s57 = sphi 0, %s57
      %s59 = sphi 0, %s57
      %s60 = sphi 0, %s59
      %s74 = sphi 0, %s60
      %s80 = sphi 0, %s82
      %s83 = sphi 0, %s80
      %s84 = sphi 0, %s83
      %s100 = sphi 0, %s84
      %s106 = sphi 0, %s108
      %s109 = sphi 0, %s106
      %s110 = sphi 0, %s109
      %s126 = sphi 0, %s110
      %s132 = sphi 0, %s134
      %s135 = sphi 0, %s132
      %s136 = sphi 0, %s135
      %s152 = sphi 0, %s136
      %s158 = sphi 0, %s160
      %s161 = sphi 0, %s158
      %s162 = sphi 0, %s161
      %s178 = sphi 0, %s162
      %s184 = sphi 0, %s186
      %s187 = sphi 0, %s184
      %s188 = sphi 0, %s187
      %s204 = sphi 0, %s188
      %s210 = sphi 0, %s212
      %s213 = sphi 0, %s210
      %s214 = sphi 0, %s213
      %s230 = sphi 0, %s214
      %s236 = sphi 0, %s238
      %s239 = sphi 0, %s236
      %s240 = sphi 0, %s239
      %s256 = sphi 0, %s240
      %s262 = sphi 0, %s264
      %s265 = sphi 0, %s262
      %s266 = sphi 0, %s265
      %s282 = sphi 0, %s266
      %s288 = sphi 0, %s290
      %s291 = sphi 0, %s288
      %s292 = sphi 0, %s291
      %s308 = sphi 0, %s292
      %s314 = sphi 0, %s316
      %s317 = sphi 0, %s314
      %s318 = sphi 0, %s317
      %s334 = sphi 0, %s318
      %s340 = sphi 0, %s342
      %s343 = sphi 0, %s340
      %s344 = sphi 0, %s343
      %s360 = sphi 0, %s344
      %s366 = sphi 0, %s368
      %s369 = sphi 0, %s366
      %s370 = sphi 0, %s369
      %s386 = sphi 0, %s370
      %s390 = sphi 0, %s390
      %s392 = sphi 0, %s390
      %s393 = sphi 0, %s392
      %s407 = sphi 0, %s393
      %s411 = sphi 0, %s411
      %s413 = sphi 0, %s411
      %s414 = sphi 0, %s413
      %s428 = sphi 0, %s414
      %s432 = sphi 0, %s432
      %s434 = sphi 0, %s432
      %s435 = sphi 0, %s434
      %s449 = sphi 0, %s435
      %s453 = sphi 0, %s453
      %s455 = sphi 0, %s453
      %s456 = sphi 0, %s455
      %s470 = sphi 0, %s456
    $region4: #{tpu_custom_call.1} parent=1 // loop_header_branch
      %31 = sbr.rel (%p29) target = $region8
    $region5: #{tpu_custom_call.1} parent=1 // loop_body
      %s33 = ssub.s32 %s28, 1
      %s34 = ssub.s32 %s28, 2
      %s35 = sadd.s32 %s28, 1
      %s37 = sadd.s32 %s36, 1
      %p40 = scmp.eq.s32.totalorder %s28, 1
      %p41 = scmp.ne.s32.totalorder %s36, %s38
      %p42 = scmp.eq.s32.totalorder %s28, 0
      %p43 = por %p41, %p42
      %p44 = scmp.ne.s32.totalorder %s36, %s38
      %p45 = scmp.eq.s32.totalorder %s33, 1
      %p46 = por %p44, %p45
      %p47 = scmp.ne.s32.totalorder %s38, %s39
      %p48 = scmp.eq.s32.totalorder %s33, 0
      %p49 = por %p47, %p48
      %p50 = scmp.ne.s32.totalorder %s38, %s39
      %p51 = scmp.eq.s32.totalorder %s34, 1
      %p52 = por %p50, %p51
      %p54 = scmp.ne.s32.totalorder %s39, %s53
      %p55 = scmp.eq.s32.totalorder %s34, 0
      %p56 = por %p54, %p55
      %s58 = sadd.s32 %s57, 1
      %p61 = scmp.eq.s32.totalorder %s28, 1
      %p62 = scmp.ne.s32.totalorder %s57, %s59
      %p63 = scmp.eq.s32.totalorder %s28, 0
      %p64 = por %p62, %p63
      %p65 = scmp.ne.s32.totalorder %s57, %s59
      %p66 = scmp.eq.s32.totalorder %s33, 1
      %p67 = por %p65, %p66
      %p68 = scmp.ne.s32.totalorder %s59, %s60
      %p69 = scmp.eq.s32.totalorder %s33, 0
      %p70 = por %p68, %p69
      %p71 = scmp.ne.s32.totalorder %s59, %s60
      %p72 = scmp.eq.s32.totalorder %s34, 1
      %p73 = por %p71, %p72
      %p75 = scmp.ne.s32.totalorder %s60, %s74
      %p76 = scmp.eq.s32.totalorder %s34, 0
      %p77 = por %p75, %p76
      %s78 = ssub.s32 %s28, %s35
      %p79 = scmp.eq.s32.totalorder %s78, 0
      %s81 = sadd.s32 %s80, 1
      %s82 = scalar_select %p79, %s80, %s81
      %p85 = pneg %p79
      %p86 = scmp.eq.s32.totalorder %s28, 1
      %p87 = por %p85, %p86
      %p88 = scmp.ne.s32.totalorder %s80, %s83
      %p89 = scmp.eq.s32.totalorder %s28, 0
      %p90 = por %p88, %p89
      %p91 = scmp.ne.s32.totalorder %s80, %s83
      %p92 = scmp.eq.s32.totalorder %s33, 1
      %p93 = por %p91, %p92
      %p94 = scmp.ne.s32.totalorder %s83, %s84
      %p95 = scmp.eq.s32.totalorder %s33, 0
      %p96 = por %p94, %p95
      %p97 = scmp.ne.s32.totalorder %s83, %s84
      %p98 = scmp.eq.s32.totalorder %s34, 1
      %p99 = por %p97, %p98
      %p101 = scmp.ne.s32.totalorder %s84, %s100
      %p102 = scmp.eq.s32.totalorder %s34, 0
      %p103 = por %p101, %p102
      %s104 = ssub.s32 %s28, %s35
      %p105 = scmp.eq.s32.totalorder %s104, 0
      %s107 = sadd.s32 %s106, 1
      %s108 = scalar_select %p105, %s106, %s107
      %p111 = pneg %p105
      %p112 = scmp.eq.s32.totalorder %s28, 1
      %p113 = por %p111, %p112
      %p114 = scmp.ne.s32.totalorder %s106, %s109
      %p115 = scmp.eq.s32.totalorder %s28, 0
      %p116 = por %p114, %p115
      %p117 = scmp.ne.s32.totalorder %s106, %s109
      %p118 = scmp.eq.s32.totalorder %s33, 1
      %p119 = por %p117, %p118
      %p120 = scmp.ne.s32.totalorder %s109, %s110
      %p121 = scmp.eq.s32.totalorder %s33, 0
      %p122 = por %p120, %p121
      %p123 = scmp.ne.s32.totalorder %s109, %s110
      %p124 = scmp.eq.s32.totalorder %s34, 1
      %p125 = por %p123, %p124
      %p127 = scmp.ne.s32.totalorder %s110, %s126
      %p128 = scmp.eq.s32.totalorder %s34, 0
      %p129 = por %p127, %p128
      %s130 = ssub.s32 %s28, %s35
      %p131 = scmp.eq.s32.totalorder %s130, 0
      %s133 = sadd.s32 %s132, 1
      %s134 = scalar_select %p131, %s132, %s133
      %p137 = pneg %p131
      %p138 = scmp.eq.s32.totalorder %s28, 1
      %p139 = por %p137, %p138
      %p140 = scmp.ne.s32.totalorder %s132, %s135
      %p141 = scmp.eq.s32.totalorder %s28, 0
      %p142 = por %p140, %p141
      %p143 = scmp.ne.s32.totalorder %s132, %s135
      %p144 = scmp.eq.s32.totalorder %s33, 1
      %p145 = por %p143, %p144
      %p146 = scmp.ne.s32.totalorder %s135, %s136
      %p147 = scmp.eq.s32.totalorder %s33, 0
      %p148 = por %p146, %p147
      %p149 = scmp.ne.s32.totalorder %s135, %s136
      %p150 = scmp.eq.s32.totalorder %s34, 1
      %p151 = por %p149, %p150
      %p153 = scmp.ne.s32.totalorder %s136, %s152
      %p154 = scmp.eq.s32.totalorder %s34, 0
      %p155 = por %p153, %p154
      %s156 = ssub.s32 %s28, %s35
      %p157 = scmp.eq.s32.totalorder %s156, 0
      %s159 = sadd.s32 %s158, 1
      %s160 = scalar_select %p157, %s158, %s159
      %p163 = pneg %p157
      %p164 = scmp.eq.s32.totalorder %s28, 1
      %p165 = por %p163, %p164
      %p166 = scmp.ne.s32.totalorder %s158, %s161
      %p167 = scmp.eq.s32.totalorder %s28, 0
      %p168 = por %p166, %p167
      %p169 = scmp.ne.s32.totalorder %s158, %s161
      %p170 = scmp.eq.s32.totalorder %s33, 1
      %p171 = por %p169, %p170
      %p172 = scmp.ne.s32.totalorder %s161, %s162
      %p173 = scmp.eq.s32.totalorder %s33, 0
      %p174 = por %p172, %p173
      %p175 = scmp.ne.s32.totalorder %s161, %s162
      %p176 = scmp.eq.s32.totalorder %s34, 1
      %p177 = por %p175, %p176
      %p179 = scmp.ne.s32.totalorder %s162, %s178
      %p180 = scmp.eq.s32.totalorder %s34, 0
      %p181 = por %p179, %p180
      %s182 = ssub.s32 %s28, %s35
      %p183 = scmp.eq.s32.totalorder %s182, 0
      %s185 = sadd.s32 %s184, 1
      %s186 = scalar_select %p183, %s184, %s185
      %p189 = pneg %p183
      %p190 = scmp.eq.s32.totalorder %s28, 1
      %p191 = por %p189, %p190
      %p192 = scmp.ne.s32.totalorder %s184, %s187
      %p193 = scmp.eq.s32.totalorder %s28, 0
      %p194 = por %p192, %p193
      %p195 = scmp.ne.s32.totalorder %s184, %s187
      %p196 = scmp.eq.s32.totalorder %s33, 1
      %p197 = por %p195, %p196
      %p198 = scmp.ne.s32.totalorder %s187, %s188
      %p199 = scmp.eq.s32.totalorder %s33, 0
      %p200 = por %p198, %p199
      %p201 = scmp.ne.s32.totalorder %s187, %s188
      %p202 = scmp.eq.s32.totalorder %s34, 1
      %p203 = por %p201, %p202
      %p205 = scmp.ne.s32.totalorder %s188, %s204
      %p206 = scmp.eq.s32.totalorder %s34, 0
      %p207 = por %p205, %p206
      %s208 = ssub.s32 %s28, %s35
      %p209 = scmp.eq.s32.totalorder %s208, 0
      %s211 = sadd.s32 %s210, 1
      %s212 = scalar_select %p209, %s210, %s211
      %p215 = pneg %p209
      %p216 = scmp.eq.s32.totalorder %s28, 1
      %p217 = por %p215, %p216
      %p218 = scmp.ne.s32.totalorder %s210, %s213
      %p219 = scmp.eq.s32.totalorder %s28, 0
      %p220 = por %p218, %p219
      %p221 = scmp.ne.s32.totalorder %s210, %s213
      %p222 = scmp.eq.s32.totalorder %s33, 1
      %p223 = por %p221, %p222
      %p224 = scmp.ne.s32.totalorder %s213, %s214
      %p225 = scmp.eq.s32.totalorder %s33, 0
      %p226 = por %p224, %p225
      %p227 = scmp.ne.s32.totalorder %s213, %s214
      %p228 = scmp.eq.s32.totalorder %s34, 1
      %p229 = por %p227, %p228
      %p231 = scmp.ne.s32.totalorder %s214, %s230
      %p232 = scmp.eq.s32.totalorder %s34, 0
      %p233 = por %p231, %p232
      %s234 = ssub.s32 %s28, %s35
      %p235 = scmp.eq.s32.totalorder %s234, 0
      %s237 = sadd.s32 %s236, 1
      %s238 = scalar_select %p235, %s236, %s237
      %p241 = pneg %p235
      %p242 = scmp.eq.s32.totalorder %s28, 1
      %p243 = por %p241, %p242
      %p244 = scmp.ne.s32.totalorder %s236, %s239
      %p245 = scmp.eq.s32.totalorder %s28, 0
      %p246 = por %p244, %p245
      %p247 = scmp.ne.s32.totalorder %s236, %s239
      %p248 = scmp.eq.s32.totalorder %s33, 1
      %p249 = por %p247, %p248
      %p250 = scmp.ne.s32.totalorder %s239, %s240
      %p251 = scmp.eq.s32.totalorder %s33, 0
      %p252 = por %p250, %p251
      %p253 = scmp.ne.s32.totalorder %s239, %s240
      %p254 = scmp.eq.s32.totalorder %s34, 1
      %p255 = por %p253, %p254
      %p257 = scmp.ne.s32.totalorder %s240, %s256
      %p258 = scmp.eq.s32.totalorder %s34, 0
      %p259 = por %p257, %p258
      %s260 = ssub.s32 %s28, %s35
      %p261 = scmp.eq.s32.totalorder %s260, 0
      %s263 = sadd.s32 %s262, 1
      %s264 = scalar_select %p261, %s262, %s263
      %p267 = pneg %p261
      %p268 = scmp.eq.s32.totalorder %s28, 1
      %p269 = por %p267, %p268
      %p270 = scmp.ne.s32.totalorder %s262, %s265
      %p271 = scmp.eq.s32.totalorder %s28, 0
      %p272 = por %p270, %p271
      %p273 = scmp.ne.s32.totalorder %s262, %s265
      %p274 = scmp.eq.s32.totalorder %s33, 1
      %p275 = por %p273, %p274
      %p276 = scmp.ne.s32.totalorder %s265, %s266
      %p277 = scmp.eq.s32.totalorder %s33, 0
      %p278 = por %p276, %p277
      %p279 = scmp.ne.s32.totalorder %s265, %s266
      %p280 = scmp.eq.s32.totalorder %s34, 1
      %p281 = por %p279, %p280
      %p283 = scmp.ne.s32.totalorder %s266, %s282
      %p284 = scmp.eq.s32.totalorder %s34, 0
      %p285 = por %p283, %p284
      %s286 = ssub.s32 %s28, %s35
      %p287 = scmp.eq.s32.totalorder %s286, 0
      %s289 = sadd.s32 %s288, 1
      %s290 = scalar_select %p287, %s288, %s289
      %p293 = pneg %p287
      %p294 = scmp.eq.s32.totalorder %s28, 1
      %p295 = por %p293, %p294
      %p296 = scmp.ne.s32.totalorder %s288, %s291
      %p297 = scmp.eq.s32.totalorder %s28, 0
      %p298 = por %p296, %p297
      %p299 = scmp.ne.s32.totalorder %s288, %s291
      %p300 = scmp.eq.s32.totalorder %s33, 1
      %p301 = por %p299, %p300
      %p302 = scmp.ne.s32.totalorder %s291, %s292
      %p303 = scmp.eq.s32.totalorder %s33, 0
      %p304 = por %p302, %p303
      %p305 = scmp.ne.s32.totalorder %s291, %s292
      %p306 = scmp.eq.s32.totalorder %s34, 1
      %p307 = por %p305, %p306
      %p309 = scmp.ne.s32.totalorder %s292, %s308
      %p310 = scmp.eq.s32.totalorder %s34, 0
      %p311 = por %p309, %p310
      %s312 = ssub.s32 %s28, %s35
      %p313 = scmp.eq.s32.totalorder %s312, 0
      %s315 = sadd.s32 %s314, 1
      %s316 = scalar_select %p313, %s314, %s315
      %p319 = pneg %p313
      %p320 = scmp.eq.s32.totalorder %s28, 1
      %p321 = por %p319, %p320
      %p322 = scmp.ne.s32.totalorder %s314, %s317
      %p323 = scmp.eq.s32.totalorder %s28, 0
      %p324 = por %p322, %p323
      %p325 = scmp.ne.s32.totalorder %s314, %s317
      %p326 = scmp.eq.s32.totalorder %s33, 1
      %p327 = por %p325, %p326
      %p328 = scmp.ne.s32.totalorder %s317, %s318
      %p329 = scmp.eq.s32.totalorder %s33, 0
      %p330 = por %p328, %p329
      %p331 = scmp.ne.s32.totalorder %s317, %s318
      %p332 = scmp.eq.s32.totalorder %s34, 1
      %p333 = por %p331, %p332
      %p335 = scmp.ne.s32.totalorder %s318, %s334
      %p336 = scmp.eq.s32.totalorder %s34, 0
      %p337 = por %p335, %p336
      %s338 = ssub.s32 %s28, %s35
      %p339 = scmp.eq.s32.totalorder %s338, 0
      %s341 = sadd.s32 %s340, 1
      %s342 = scalar_select %p339, %s340, %s341
      %p345 = pneg %p339
      %p346 = scmp.eq.s32.totalorder %s28, 1
      %p347 = por %p345, %p346
      %p348 = scmp.ne.s32.totalorder %s340, %s343
      %p349 = scmp.eq.s32.totalorder %s28, 0
      %p350 = por %p348, %p349
      %p351 = scmp.ne.s32.totalorder %s340, %s343
      %p352 = scmp.eq.s32.totalorder %s33, 1
      %p353 = por %p351, %p352
      %p354 = scmp.ne.s32.totalorder %s343, %s344
      %p355 = scmp.eq.s32.totalorder %s33, 0
      %p356 = por %p354, %p355
      %p357 = scmp.ne.s32.totalorder %s343, %s344
      %p358 = scmp.eq.s32.totalorder %s34, 1
      %p359 = por %p357, %p358
      %p361 = scmp.ne.s32.totalorder %s344, %s360
      %p362 = scmp.eq.s32.totalorder %s34, 0
      %p363 = por %p361, %p362
      %s364 = ssub.s32 %s28, %s35
      %p365 = scmp.eq.s32.totalorder %s364, 0
      %s367 = sadd.s32 %s366, 1
      %s368 = scalar_select %p365, %s366, %s367
      %p371 = pneg %p365
      %p372 = scmp.eq.s32.totalorder %s28, 1
      %p373 = por %p371, %p372
      %p374 = scmp.ne.s32.totalorder %s366, %s369
      %p375 = scmp.eq.s32.totalorder %s28, 0
      %p376 = por %p374, %p375
      %p377 = scmp.ne.s32.totalorder %s366, %s369
      %p378 = scmp.eq.s32.totalorder %s33, 1
      %p379 = por %p377, %p378
      %p380 = scmp.ne.s32.totalorder %s369, %s370
      %p381 = scmp.eq.s32.totalorder %s33, 0
      %p382 = por %p380, %p381
      %p383 = scmp.ne.s32.totalorder %s369, %s370
      %p384 = scmp.eq.s32.totalorder %s34, 1
      %p385 = por %p383, %p384
      %p387 = scmp.ne.s32.totalorder %s370, %s386
      %p388 = scmp.eq.s32.totalorder %s34, 0
      %p389 = por %p387, %p388
      %s391 = sadd.s32 %s390, 1
      %p394 = scmp.eq.s32.totalorder %s28, 1
      %p395 = scmp.ne.s32.totalorder %s390, %s392
      %p396 = scmp.eq.s32.totalorder %s28, 0
      %p397 = por %p395, %p396
      %p398 = scmp.ne.s32.totalorder %s390, %s392
      %p399 = scmp.eq.s32.totalorder %s33, 1
      %p400 = por %p398, %p399
      %p401 = scmp.ne.s32.totalorder %s392, %s393
      %p402 = scmp.eq.s32.totalorder %s33, 0
      %p403 = por %p401, %p402
      %p404 = scmp.ne.s32.totalorder %s392, %s393
      %p405 = scmp.eq.s32.totalorder %s34, 1
      %p406 = por %p404, %p405
      %p408 = scmp.ne.s32.totalorder %s393, %s407
      %p409 = scmp.eq.s32.totalorder %s34, 0
      %p410 = por %p408, %p409
      %s412 = sadd.s32 %s411, 1
      %p415 = scmp.eq.s32.totalorder %s28, 1
      %p416 = scmp.ne.s32.totalorder %s411, %s413
      %p417 = scmp.eq.s32.totalorder %s28, 0
      %p418 = por %p416, %p417
      %p419 = scmp.ne.s32.totalorder %s411, %s413
      %p420 = scmp.eq.s32.totalorder %s33, 1
      %p421 = por %p419, %p420
      %p422 = scmp.ne.s32.totalorder %s413, %s414
      %p423 = scmp.eq.s32.totalorder %s33, 0
      %p424 = por %p422, %p423
      %p425 = scmp.ne.s32.totalorder %s413, %s414
      %p426 = scmp.eq.s32.totalorder %s34, 1
      %p427 = por %p425, %p426
      %p429 = scmp.ne.s32.totalorder %s414, %s428
      %p430 = scmp.eq.s32.totalorder %s34, 0
      %p431 = por %p429, %p430
      %s433 = sadd.s32 %s432, 1
      %p436 = scmp.eq.s32.totalorder %s28, 1
      %p437 = scmp.ne.s32.totalorder %s432, %s434
      %p438 = scmp.eq.s32.totalorder %s28, 0
      %p439 = por %p437, %p438
      %p440 = scmp.ne.s32.totalorder %s432, %s434
      %p441 = scmp.eq.s32.totalorder %s33, 1
      %p442 = por %p440, %p441
      %p443 = scmp.ne.s32.totalorder %s434, %s435
      %p444 = scmp.eq.s32.totalorder %s33, 0
      %p445 = por %p443, %p444
      %p446 = scmp.ne.s32.totalorder %s434, %s435
      %p447 = scmp.eq.s32.totalorder %s34, 1
      %p448 = por %p446, %p447
      %p450 = scmp.ne.s32.totalorder %s435, %s449
      %p451 = scmp.eq.s32.totalorder %s34, 0
      %p452 = por %p450, %p451
      %s454 = sadd.s32 %s453, 1
      %p457 = scmp.eq.s32.totalorder %s28, 1
      %p458 = scmp.ne.s32.totalorder %s453, %s455
      %p459 = scmp.eq.s32.totalorder %s28, 0
      %p460 = por %p458, %p459
      %p461 = scmp.ne.s32.totalorder %s453, %s455
      %p462 = scmp.eq.s32.totalorder %s33, 1
      %p463 = por %p461, %p462
      %p464 = scmp.ne.s32.totalorder %s455, %s456
      %p465 = scmp.eq.s32.totalorder %s33, 0
      %p466 = por %p464, %p465
      %p467 = scmp.ne.s32.totalorder %s455, %s456
      %p468 = scmp.eq.s32.totalorder %s34, 1
      %p469 = por %p467, %p468
      %p471 = scmp.ne.s32.totalorder %s456, %s470
      %p472 = scmp.eq.s32.totalorder %s34, 0
      %p473 = por %p471, %p472
      %p474 = scmp.le.s32.totalorder 1, %s28
      %p475 = scmp.lt.s32.totalorder %s28, 3
      %p476 = pnand %p474, %p475
      %p477 = pneg %p476
      // Predicated region
      $region9: #{tpu_custom_call.1} parent=5 // pred_check
        _
      $region10: #{tpu_custom_call.1} parent=5 // pred_check_branch
        %479 = sbr.rel (%p476) target = $region12
      $region11: #{tpu_custom_call.1} parent=5 // pred_region
        %s480 = ssub.s32 %s28, 1
        // Predicated region
        $region13: #{tpu_custom_call.1} parent=11 // pred_check
          %p481 = pneg %p49
        $region14: #{tpu_custom_call.1} parent=11 // pred_check_branch
          %483 = sbr.rel (%p481) target = $region16
        $region15: #{tpu_custom_call.1} parent=11 // pred_region
          %s485 = ssub.s32 256, 256
          %486 = vsyncadd [#allocation4], %s485
          %s487 = sshll.u32 [#allocation3], 4
          %s488 = int_to_ptr.vmem [resolvable:$true] %s487
          %493 = dma.hbm_to_vmem [thread:$0]  %s0, 256, %s488, [#allocation4], 128, 128, 8
        $region16: #{tpu_custom_call.1} parent=11 // pred_fallthru
          _
        // Predicated region
        $region17: #{tpu_custom_call.1} parent=11 // pred_check
          %p494 = pneg %p70
        $region18: #{tpu_custom_call.1} parent=11 // pred_check_branch
          %496 = sbr.rel (%p494) target = $region20
        $region19: #{tpu_custom_call.1} parent=11 // pred_region
          %s498 = ssub.s32 256, 256
          %499 = vsyncadd [#allocation7], %s498
          %s500 = sshll.u32 [#allocation6], 4
          %s501 = int_to_ptr.vmem [resolvable:$true] %s500
          %506 = dma.hbm_to_vmem [thread:$0]  %s1, 256, %s501, [#allocation7], 128, 128, 8
        $region20: #{tpu_custom_call.1} parent=11 // pred_fallthru
          _
        // Predicated region
        $region21: #{tpu_custom_call.1} parent=11 // pred_check
          %p507 = pneg %p403
        $region22: #{tpu_custom_call.1} parent=11 // pred_check_branch
          %509 = sbr.rel (%p507) target = $region24
        $region23: #{tpu_custom_call.1} parent=11 // pred_region
          _
        $region24: #{tpu_custom_call.1} parent=11 // pred_fallthru
          _
        // Predicated region
        $region25: #{tpu_custom_call.1} parent=11 // pred_check
          %p510 = pneg %p424
        $region26: #{tpu_custom_call.1} parent=11 // pred_check_branch
          %512 = sbr.rel (%p510) target = $region28
        $region27: #{tpu_custom_call.1} parent=11 // pred_region
          _
        $region28: #{tpu_custom_call.1} parent=11 // pred_fallthru
          _
      $region12: #{tpu_custom_call.1} parent=5 // pred_fallthru
        _
      %p513 = scmp.lt.s32.totalorder %s28, 2
      // Predicated region
      $region29: #{tpu_custom_call.1} parent=5 // pred_check
        %p514 = pneg %p513
      $region30: #{tpu_custom_call.1} parent=5 // pred_check_branch
        %516 = sbr.rel (%p514) target = $region32
      $region31: #{tpu_custom_call.1} parent=5 // pred_region
        // Predicated region
        $region33: #{tpu_custom_call.1} parent=31 // pred_check
          %p517 = pneg %p90
        $region34: #{tpu_custom_call.1} parent=31 // pred_check_branch
          %519 = sbr.rel (%p517) target = $region36
        $region35: #{tpu_custom_call.1} parent=31 // pred_region
          %p520 = scmp.lt.s32.totalorder %s28, 1
          %s521 = scalar_select %p520, %s28, 1
          %s522 = smul.addr %s521, 4
          %s523 = smul.addr %s522, 8
          %s524 = scalar_lea.vmem %s2, %s523
        $region36: #{tpu_custom_call.1} parent=31 // pred_fallthru
          _
        // Predicated region
        $region37: #{tpu_custom_call.1} parent=31 // pred_check
          %p525 = pneg %p116
        $region38: #{tpu_custom_call.1} parent=31 // pred_check_branch
          %527 = sbr.rel (%p525) target = $region40
        $region39: #{tpu_custom_call.1} parent=31 // pred_region
          %p528 = scmp.lt.s32.totalorder %s28, 1
          %s529 = scalar_select %p528, %s28, 1
          %s530 = scalar_lea.vmem %s3, %s529
        $region40: #{tpu_custom_call.1} parent=31 // pred_fallthru
          _
        // Predicated region
        $region41: #{tpu_custom_call.1} parent=31 // pred_check
          %p531 = pneg %p142
        $region42: #{tpu_custom_call.1} parent=31 // pred_check_branch
          %533 = sbr.rel (%p531) target = $region44
        $region43: #{tpu_custom_call.1} parent=31 // pred_region
          %p534 = scmp.lt.s32.totalorder %s28, 1
          %s535 = scalar_select %p534, %s28, 1
          %s536 = smul.addr %s535, 4
          %s537 = smul.addr %s536, 8
          %s538 = scalar_lea.vmem %s4, %s537
        $region44: #{tpu_custom_call.1} parent=31 // pred_fallthru
          _
        // Predicated region
        $region45: #{tpu_custom_call.1} parent=31 // pred_check
          %p539 = pneg %p168
        $region46: #{tpu_custom_call.1} parent=31 // pred_check_branch
          %541 = sbr.rel (%p539) target = $region48
        $region47: #{tpu_custom_call.1} parent=31 // pred_region
          %s542 = sand.u32 %s28, 1
          %s543 = scalar_lea.sflag [#allocation4], %s542
          %s544 = sand.u32 %s158, 1
          %s545 = scalar_lea.vmem [#allocation8], %s544
          %s547 = ssub.s32 16, 16
          %548 = vsyncadd %s543, %s547
          %s549 = smul.addr %s28, 16
          %s550 = scalar_lea.hbm %s5, %s549
          %s552 = sshll.u32 %s545, 4
          %s553 = int_to_ptr.vmem [resolvable:$true] %s552
          %555 = dma.hbm_to_vmem [thread:$0]  %s550, 16, %s553, %s543
        $region48: #{tpu_custom_call.1} parent=31 // pred_fallthru
          _
        // Predicated region
        $region49: #{tpu_custom_call.1} parent=31 // pred_check
          %p556 = pneg %p194
        $region50: #{tpu_custom_call.1} parent=31 // pred_check_branch
          %558 = sbr.rel (%p556) target = $region52
        $region51: #{tpu_custom_call.1} parent=31 // pred_region
          %s559 = sand.u32 %s28, 1
          %s560 = scalar_lea.sflag [#allocation4], %s559
          %s561 = sand.u32 %s184, 1
          %s562 = scalar_lea.vmem [#allocation9], %s561
          %s564 = ssub.s32 16, 16
          %565 = vsyncadd %s560, %s564
          %s566 = smul.addr %s28, 16
          %s567 = scalar_lea.hbm %s6, %s566
          %s569 = sshll.u32 %s562, 4
          %s570 = int_to_ptr.vmem [resolvable:$true] %s569
          %572 = dma.hbm_to_vmem [thread:$0]  %s567, 16, %s570, %s560
        $region52: #{tpu_custom_call.1} parent=31 // pred_fallthru
          _
        // Predicated region
        $region53: #{tpu_custom_call.1} parent=31 // pred_check
          %p573 = pneg %p220
        $region54: #{tpu_custom_call.1} parent=31 // pred_check_branch
          %575 = sbr.rel (%p573) target = $region56
        $region55: #{tpu_custom_call.1} parent=31 // pred_region
          %s576 = sand.u32 %s28, 1
          %s577 = scalar_lea.sflag [#allocation4], %s576
          %s578 = sand.u32 %s210, 1
          %s579 = scalar_lea.vmem [#allocation10], %s578
          %s581 = ssub.s32 16, 16
          %582 = vsyncadd %s577, %s581
          %s583 = smul.addr %s28, 16
          %s584 = scalar_lea.hbm %s7, %s583
          %s586 = sshll.u32 %s579, 4
          %s587 = int_to_ptr.vmem [resolvable:$true] %s586
          %589 = dma.hbm_to_vmem [thread:$0]  %s584, 16, %s587, %s577
        $region56: #{tpu_custom_call.1} parent=31 // pred_fallthru
          _
        // Predicated region
        $region57: #{tpu_custom_call.1} parent=31 // pred_check
          %p590 = pneg %p246
        $region58: #{tpu_custom_call.1} parent=31 // pred_check_branch
          %592 = sbr.rel (%p590) target = $region60
        $region59: #{tpu_custom_call.1} parent=31 // pred_region
          %p593 = scmp.lt.s32.totalorder %s28, 1
          %s594 = scalar_select %p593, %s28, 1
          %s595 = smul.addr %s594, 4
          %s596 = smul.addr %s595, 8
          %s597 = scalar_lea.vmem %s8, %s596
        $region60: #{tpu_custom_call.1} parent=31 // pred_fallthru
          _
        // Predicated region
        $region61: #{tpu_custom_call.1} parent=31 // pred_check
          %p598 = pneg %p272
        $region62: #{tpu_custom_call.1} parent=31 // pred_check_branch
          %600 = sbr.rel (%p598) target = $region64
        $region63: #{tpu_custom_call.1} parent=31 // pred_region
          %s601 = sand.u32 %s28, 1
          %s602 = scalar_lea.sflag [#allocation4], %s601
          %s603 = sand.u32 %s262, 1
          %s604 = scalar_lea.vmem [#allocation11], %s603
          %s606 = ssub.s32 16, 16
          %607 = vsyncadd %s602, %s606
          %s608 = smul.addr %s28, 16
          %s609 = scalar_lea.hbm %s9, %s608
          %s611 = sshll.u32 %s604, 4
          %s612 = int_to_ptr.vmem [resolvable:$true] %s611
          %614 = dma.hbm_to_vmem [thread:$0]  %s609, 16, %s612, %s602
        $region64: #{tpu_custom_call.1} parent=31 // pred_fallthru
          _
        // Predicated region
        $region65: #{tpu_custom_call.1} parent=31 // pred_check
          %p615 = pneg %p298
        $region66: #{tpu_custom_call.1} parent=31 // pred_check_branch
          %617 = sbr.rel (%p615) target = $region68
        $region67: #{tpu_custom_call.1} parent=31 // pred_region
          %p618 = scmp.lt.s32.totalorder %s28, 1
          %s619 = scalar_select %p618, %s28, 1
          %s620 = smul.addr %s619, 8
          %s621 = smul.addr %s620, 8
          %s622 = scalar_lea.vmem %s10, %s621
        $region68: #{tpu_custom_call.1} parent=31 // pred_fallthru
          _
        // Predicated region
        $region69: #{tpu_custom_call.1} parent=31 // pred_check
          %p623 = pneg %p324
        $region70: #{tpu_custom_call.1} parent=31 // pred_check_branch
          %625 = sbr.rel (%p623) target = $region72
        $region71: #{tpu_custom_call.1} parent=31 // pred_region
          %p626 = scmp.lt.s32.totalorder %s28, 1
          %s627 = scalar_select %p626, %s28, 1
          %s628 = scalar_lea.vmem %s11, %s627
        $region72: #{tpu_custom_call.1} parent=31 // pred_fallthru
          _
        // Predicated region
        $region73: #{tpu_custom_call.1} parent=31 // pred_check
          %p629 = pneg %p350
        $region74: #{tpu_custom_call.1} parent=31 // pred_check_branch
          %631 = sbr.rel (%p629) target = $region76
        $region75: #{tpu_custom_call.1} parent=31 // pred_region
          %p632 = scmp.lt.s32.totalorder %s28, 1
          %s633 = scalar_select %p632, %s28, 1
          %s634 = scalar_lea.vmem %s12, %s633
        $region76: #{tpu_custom_call.1} parent=31 // pred_fallthru
          _
        // Predicated region
        $region77: #{tpu_custom_call.1} parent=31 // pred_check
          %p635 = pneg %p376
        $region78: #{tpu_custom_call.1} parent=31 // pred_check_branch
          %637 = sbr.rel (%p635) target = $region80
        $region79: #{tpu_custom_call.1} parent=31 // pred_region
          %p638 = scmp.lt.s32.totalorder %s28, 1
          %s639 = scalar_select %p638, %s28, 1
          %s640 = scalar_lea.vmem %s13, %s639
        $region80: #{tpu_custom_call.1} parent=31 // pred_fallthru
          _
      $region32: #{tpu_custom_call.1} parent=5 // pred_fallthru
        _
      %p641 = scmp.le.s32.totalorder 1, %s28
      %p642 = scmp.lt.s32.totalorder %s28, 3
      %p643 = pnand %p641, %p642
      %p644 = pneg %p643
      // Predicated region
      $region81: #{tpu_custom_call.1} parent=5 // pred_check
        _
      $region82: #{tpu_custom_call.1} parent=5 // pred_check_branch
        %646 = sbr.rel (%p643) target = $region84
      $region83: #{tpu_custom_call.1} parent=5 // pred_region
        %s647 = ssub.s32 %s28, 1
        // Predicated region
        $region85: #{tpu_custom_call.1} parent=83 // pred_check
          %p648 = pneg %p49
        $region86: #{tpu_custom_call.1} parent=83 // pred_check_branch
          %650 = sbr.rel (%p648) target = $region88
        $region87: #{tpu_custom_call.1} parent=83 // pred_region
          %651 = dma.done [#allocation4], 256
        $region88: #{tpu_custom_call.1} parent=83 // pred_fallthru
          _
        // Predicated region
        $region89: #{tpu_custom_call.1} parent=83 // pred_check
          %p652 = pneg %p70
        $region90: #{tpu_custom_call.1} parent=83 // pred_check_branch
          %654 = sbr.rel (%p652) target = $region92
        $region91: #{tpu_custom_call.1} parent=83 // pred_region
          %655 = dma.done [#allocation7], 256
        $region92: #{tpu_custom_call.1} parent=83 // pred_fallthru
          _
        %s656 = sand.u32 %s33, 1
        %s657 = scalar_lea.sflag [#allocation4], %s656
        %s658 = sand.u32 %s161, 1
        %s659 = scalar_lea.vmem [#allocation8], %s658
        // Predicated region
        $region93: #{tpu_custom_call.1} parent=83 // pred_check
          %p660 = pneg %p174
        $region94: #{tpu_custom_call.1} parent=83 // pred_check_branch
          %662 = sbr.rel (%p660) target = $region96
        $region95: #{tpu_custom_call.1} parent=83 // pred_region
          %663 = dma.done %s657, 16
        $region96: #{tpu_custom_call.1} parent=83 // pred_fallthru
          _
        %s664 = sand.u32 %s33, 1
        %s665 = scalar_lea.sflag [#allocation4], %s664
        %s666 = sand.u32 %s187, 1
        %s667 = scalar_lea.vmem [#allocation9], %s666
        // Predicated region
        $region97: #{tpu_custom_call.1} parent=83 // pred_check
          %p668 = pneg %p200
        $region98: #{tpu_custom_call.1} parent=83 // pred_check_branch
          %670 = sbr.rel (%p668) target = $region100
        $region99: #{tpu_custom_call.1} parent=83 // pred_region
          %671 = dma.done %s665, 16
        $region100: #{tpu_custom_call.1} parent=83 // pred_fallthru
          _
        %s672 = sand.u32 %s33, 1
        %s673 = scalar_lea.sflag [#allocation4], %s672
        %s674 = sand.u32 %s213, 1
        %s675 = scalar_lea.vmem [#allocation10], %s674
        // Predicated region
        $region101: #{tpu_custom_call.1} parent=83 // pred_check
          %p676 = pneg %p226
        $region102: #{tpu_custom_call.1} parent=83 // pred_check_branch
          %678 = sbr.rel (%p676) target = $region104
        $region103: #{tpu_custom_call.1} parent=83 // pred_region
          %679 = dma.done %s673, 16
        $region104: #{tpu_custom_call.1} parent=83 // pred_fallthru
          _
        %s680 = sand.u32 %s33, 1
        %s681 = scalar_lea.sflag [#allocation4], %s680
        %s682 = sand.u32 %s265, 1
        %s683 = scalar_lea.vmem [#allocation11], %s682
        // Predicated region
        $region105: #{tpu_custom_call.1} parent=83 // pred_check
          %p684 = pneg %p278
        $region106: #{tpu_custom_call.1} parent=83 // pred_check_branch
          %686 = sbr.rel (%p684) target = $region108
        $region107: #{tpu_custom_call.1} parent=83 // pred_region
          %687 = dma.done %s681, 16
        $region108: #{tpu_custom_call.1} parent=83 // pred_fallthru
          _
        %p688 = pneg %p49
        %p689 = pneg %p46
        %p690 = pneg %p70
        %p691 = pneg %p67
        %p692 = scmp.lt.s32.totalorder %s33, 1
        %s693 = scalar_select %p692, %s33, 1
        %s694 = smul.addr %s693, 4
        %s695 = smul.addr %s694, 8
        %s696 = scalar_lea.vmem %s2, %s695
        %p697 = pneg %p96
        %p698 = pneg %p93
        %p699 = scmp.lt.s32.totalorder %s33, 1
        %s700 = scalar_select %p699, %s33, 1
        %s701 = scalar_lea.vmem %s3, %s700
        %p702 = pneg %p122
        %p703 = pneg %p119
        %p704 = scmp.lt.s32.totalorder %s33, 1
        %s705 = scalar_select %p704, %s33, 1
        %s706 = smul.addr %s705, 4
        %s707 = smul.addr %s706, 8
        %s708 = scalar_lea.vmem %s4, %s707
        %p709 = pneg %p148
        %p710 = pneg %p145
        %s711 = sand.u32 %s33, 1
        %s712 = scalar_lea.sflag [#allocation4], %s711
        %s713 = sand.u32 %s161, 1
        %s714 = scalar_lea.vmem [#allocation8], %s713
        %p715 = pneg %p174
        %p716 = pneg %p171
        %s717 = sand.u32 %s33, 1
        %s718 = scalar_lea.sflag [#allocation4], %s717
        %s719 = sand.u32 %s187, 1
        %s720 = scalar_lea.vmem [#allocation9], %s719
        %p721 = pneg %p200
        %p722 = pneg %p197
        %s723 = sand.u32 %s33, 1
        %s724 = scalar_lea.sflag [#allocation4], %s723
        %s725 = sand.u32 %s213, 1
        %s726 = scalar_lea.vmem [#allocation10], %s725
        %p727 = pneg %p226
        %p728 = pneg %p223
        %p729 = scmp.lt.s32.totalorder %s33, 1
        %s730 = scalar_select %p729, %s33, 1
        %s731 = smul.addr %s730, 4
        %s732 = smul.addr %s731, 8
        %s733 = scalar_lea.vmem %s8, %s732
        %p734 = pneg %p252
        %p735 = pneg %p249
        %s736 = sand.u32 %s33, 1
        %s737 = scalar_lea.sflag [#allocation4], %s736
        %s738 = sand.u32 %s265, 1
        %s739 = scalar_lea.vmem [#allocation11], %s738
        %p740 = pneg %p278
        %p741 = pneg %p275
        %p742 = scmp.lt.s32.totalorder %s33, 1
        %s743 = scalar_select %p742, %s33, 1
        %s744 = smul.addr %s743, 8
        %s745 = smul.addr %s744, 8
        %s746 = scalar_lea.vmem %s10, %s745
        %p747 = pneg %p304
        %p748 = pneg %p301
        %p749 = scmp.lt.s32.totalorder %s33, 1
        %s750 = scalar_select %p749, %s33, 1
        %s751 = scalar_lea.vmem %s11, %s750
        %p752 = pneg %p330
        %p753 = pneg %p327
        %p754 = scmp.lt.s32.totalorder %s33, 1
        %s755 = scalar_select %p754, %s33, 1
        %s756 = scalar_lea.vmem %s12, %s755
        %p757 = pneg %p356
        %p758 = pneg %p353
        %p759 = scmp.lt.s32.totalorder %s33, 1
        %s760 = scalar_select %p759, %s33, 1
        %s761 = scalar_lea.vmem %s13, %s760
        %p762 = pneg %p382
        %p763 = pneg %p379
        %p764 = pneg %p403
        %p765 = pneg %p400
        %p766 = pneg %p424
        %p767 = pneg %p421
        %p768 = pneg %p445
        %p769 = pneg %p442
        %p770 = pneg %p466
        %p771 = pneg %p463
        %p772 = scmp.lt.s32.totalorder %s33, 1
        %s773 = scalar_select %p772, %s33, 1
        %s774 = smul.addr %s773, 4
        %s775 = smul.addr %s774, 8
        %s776 = scalar_lea.vmem %s2, %s775
        %p777 = scmp.lt.s32.totalorder %s33, 1
        %s778 = scalar_select %p777, %s33, 1
        %s779 = scalar_lea.vmem %s3, %s778
        %p780 = scmp.lt.s32.totalorder %s33, 1
        %s781 = scalar_select %p780, %s33, 1
        %s782 = smul.addr %s781, 4
        %s783 = smul.addr %s782, 8
        %s784 = scalar_lea.vmem %s4, %s783
        %p785 = scmp.lt.s32.totalorder %s33, 1
        %s786 = scalar_select %p785, %s33, 1
        %s787 = smul.addr %s786, 4
        %s788 = smul.addr %s787, 8
        %s789 = scalar_lea.vmem %s8, %s788
        %p790 = scmp.lt.s32.totalorder %s33, 1
        %s791 = scalar_select %p790, %s33, 1
        %s792 = smul.addr %s791, 8
        %s793 = smul.addr %s792, 8
        %s794 = scalar_lea.vmem %s10, %s793
        %p795 = scmp.lt.s32.totalorder %s33, 1
        %s796 = scalar_select %p795, %s33, 1
        %s797 = scalar_lea.vmem %s11, %s796
        %p798 = scmp.lt.s32.totalorder %s33, 1
        %s799 = scalar_select %p798, %s33, 1
        %s800 = scalar_lea.vmem %s12, %s799
        %p801 = scmp.lt.s32.totalorder %s33, 1
        %s802 = scalar_select %p801, %s33, 1
        %s803 = scalar_lea.vmem %s13, %s802
        %p804 = scmp.eq.s32.totalorder %s33, 0
        // Predicated region
        $region109: #{tpu_custom_call.1} parent=83 // pred_check
          %p805 = pneg %p804
        $region110: #{tpu_custom_call.1} parent=83 // pred_check_branch
          %807 = sbr.rel (%p805) target = $region112
        $region111: #{tpu_custom_call.1} parent=83 // pred_region
          %v808 = vld [vmem:[#allocation3] sm:$0xff]
          %v809 = vld [vmem:[#allocation3 + $0x8] sm:$0xff]
          %vm810 = vcmask 261120
          %811 = vst.msk [vmem:[#allocation2] sm:$0xff] %vm810, %v808
          %812 = vst.msk [vmem:[#allocation2 + $0x8] sm:$0xff] %vm810, %v809
        $region112: #{tpu_custom_call.1} parent=83 // pred_fallthru
          _
        %v813 = vld [vmem:[#allocation2] sm:$0xff]
        %v814 = vld [vmem:[#allocation2 + $0x8] sm:$0xff]
        %v815 = vld [vmem:[#allocation6] sm:$0xff]
        %v816 = vld [vmem:[#allocation6 + $0x8] sm:$0xff]
        %v817 = vld [vmem:[%s776] sm:$0xff]
        %v818 = vld [vmem:[%s776 + $0x8] sm:$0xff]
        %v819 = vld [vmem:[%s776 + $0x10] sm:$0xff]
        %v820 = vld [vmem:[%s776 + $0x18] sm:$0xff]
        %v821 = vld [vmem:[%s779] sm:$0x1]
        %v823 = vlaneseq
        %v824 = vshrl.u32 %v823, 7
        %v825 = vsub.s32 0, %v824
        %v826 = vrot.slane %v821, %v825
        %vm828 = vcmask 261120
        %v830 = vsel %vm828, %v813, 0
        %v833 = vsel %vm828, %v814, 0
        %835 = vmatprep.subr.mxu0 0.0
        %836 = vmatpush1.msra.mxu0 %v817
        %837 = vmatprep.subr.mxu0 0.0
        %838 = vmatpush1.msra.mxu0 %v818
        %839 = vmatprep.subr.mxu0 0.0
        %840 = vmatpush1.msra.mxu0 %v819
        %841 = vmatprep.subr.mxu0 0.0
        %842 = vmatpush1.msra.mxu0 %v820
        %843 = vmatprep.subr.mxu0 0.0
        %844 = vmatpush1.msra.mxu0 0.0
        %845 = vmatprep.subr.mxu0 0.0
        %846 = vmatpush1.msra.mxu0 0.0
        %847 = vmatprep.subr.mxu0 0.0
        %848 = vmatpush1.msra.mxu0 0.0
        %849 = vmatprep.subr.mxu0 0.0
        %850 = vmatpush1.msra.mxu0 0.0
        %851 = vmatprep.subr.mxu0 0.0
        %852 = vmatpush1.msra.mxu0 0.0
        %853 = vmatprep.subr.mxu0 0.0
        %854 = vmatpush1.msra.mxu0 0.0
        %855 = vmatprep.subr.mxu0 0.0
        %856 = vmatpush1.msra.mxu0 0.0
        %857 = vmatprep.subr.mxu0 0.0
        %858 = vmatpush1.msra.mxu0 0.0
        %859 = vmatprep.subr.mxu0 0.0
        %860 = vmatpush1.msra.mxu0 0.0
        %861 = vmatprep.subr.mxu0 0.0
        %862 = vmatpush1.msra.mxu0 0.0
        %863 = vmatprep.subr.mxu0 0.0
        %864 = vmatpush1.msra.mxu0 0.0
        %865 = vmatprep.subr.mxu0 0.0
        %866 = vmatpush1.msra.mxu0 0.0
        %867 = vmatprep.subr.mxu0 0.0
        %868 = vmatpush1.msra.mxu0 0.0
        %869 = vmatprep.subr.mxu0 0.0
        %870 = vmatpush1.msra.mxu0 0.0
        %871 = vmatprep.subr.mxu0 0.0
        %872 = vmatpush1.msra.mxu0 0.0
        %873 = vmatprep.subr.mxu0 0.0
        %874 = vmatpush1.msra.mxu0 0.0
        %875 = vmatprep.subr.mxu0 0.0
        %876 = vmatpush1.msra.mxu0 0.0
        %877 = vmatprep.subr.mxu0 0.0
        %878 = vmatpush1.msra.mxu0 0.0
        %879 = vmatprep.subr.mxu0 0.0
        %880 = vmatpush1.msra.mxu0 0.0
        %881 = vmatprep.subr.mxu0 0.0
        %882 = vmatpush1.msra.mxu0 0.0
        %883 = vmatprep.subr.mxu0 0.0
        %884 = vmatpush1.msra.mxu0 0.0
        %885 = vmatprep.subr.mxu0 0.0
        %886 = vmatpush1.msra.mxu0 0.0
        %887 = vmatprep.subr.mxu0 0.0
        %888 = vmatpush1.msra.mxu0 0.0
        %889 = vmatprep.subr.mxu0 0.0
        %890 = vmatpush1.msra.mxu0 0.0
        %891 = vmatprep.subr.mxu0 0.0
        %892 = vmatpush1.msra.mxu0 0.0
        %893 = vmatprep.subr.mxu0 0.0
        %894 = vmatpush1.msra.mxu0 0.0
        %895 = vmatprep.subr.mxu0 0.0
        %896 = vmatpush1.msra.mxu0 0.0
        %897 = vmatprep.subr.mxu0 0.0
        %898 = vmatpush1.msra.mxu0 0.0
        %899 = vmatprep.mubr.f32.mxu0 0.0
        %900 = vmatmul.mubr.f32.gmra.mrb[0].mxu0 %v830
        %v901 = vpop.f32.mrb[0].mxu0
        %v902 = vadd.f32 %v826, %v901
        %v903 = vpop.f32.mrb[0].mxu0
        %904 = vmatprep.mubr.f32.mxu0 0.0
        %905 = vmatmul.mubr.f32.gmra.mrb[0].mxu0 %v833
        %v906 = vpop.f32.mrb[0].mxu0
        %v907 = vadd.f32 %v826, %v906
        %v908 = vpop.f32.mrb[0].mxu0
        %909 = vdwg.mxu0
        %v910 = vld [vmem:[%s784] sm:$0xff]
        %v911 = vld [vmem:[%s784 + $0x8] sm:$0xff]
        %v912 = vld [vmem:[%s784 + $0x10] sm:$0xff]
        %v913 = vld [vmem:[%s784 + $0x18] sm:$0xff]
        %916 = vrot.lane.b32.xlu0 %v902, 96
        %v917 = vpop.permute.xlu0 %916
        %918 = vrot.lane.b32.xlu0 %v907, 96
        %v919 = vpop.permute.xlu0 %918
        %vm920 = vcmask 64512
        %v921 = vsel %vm920, %v902, 0
        %v923 = vsel %vm920, %v907, 0
        %v925 = vsel %vm920, %v917, 0
        %v927 = vsel %vm920, %v919, 0
        %929 = vmatprep.subr.mxu0 0.0
        %930 = vmatpush1.xpose.msra.mxu0 %v925
        %931 = vmatprep.subr.mxu0 0.0
        %932 = vmatpush1.xpose.msra.mxu0 %v927
        %933 = vmatprep.subr.mxu0 0.0
        %934 = vmatpush1.xpose.msra.mxu0 0.0
        %935 = vmatprep.subr.mxu0 0.0
        %936 = vmatpush1.xpose.msra.mxu0 0.0
        %937 = vmatprep.subr.mxu0 0.0
        %938 = vmatpush1.xpose.msra.mxu0 0.0
        %939 = vmatprep.subr.mxu0 0.0
        %940 = vmatpush1.xpose.msra.mxu0 0.0
        %941 = vmatprep.subr.mxu0 0.0
        %942 = vmatpush1.xpose.msra.mxu0 0.0
        %943 = vmatprep.subr.mxu0 0.0
        %944 = vmatpush1.xpose.msra.mxu0 0.0
        %945 = vmatprep.subr.mxu0 0.0
        %946 = vmatpush1.xpose.msra.mxu0 0.0
        %947 = vmatprep.subr.mxu0 0.0
        %948 = vmatpush1.xpose.msra.mxu0 0.0
        %949 = vmatprep.subr.mxu0 0.0
        %950 = vmatpush1.xpose.msra.mxu0 0.0
        %951 = vmatprep.subr.mxu0 0.0
        %952 = vmatpush1.xpose.msra.mxu0 0.0
        %953 = vmatprep.subr.mxu0 0.0
        %954 = vmatpush1.xpose.msra.mxu0 0.0
        %955 = vmatprep.subr.mxu0 0.0
        %956 = vmatpush1.xpose.msra.mxu0 0.0
        %957 = vmatprep.subr.mxu0 0.0
        %958 = vmatpush1.xpose.msra.mxu0 0.0
        %959 = vmatprep.subr.mxu0 0.0
        %960 = vmatpush1.xpose.msra.mxu0 0.0
        %961 = vmatprep.subr.mxu0 0.0
        %962 = vmatpush1.xpose.msra.mxu0 0.0
        %963 = vmatprep.subr.mxu0 0.0
        %964 = vmatpush1.xpose.msra.mxu0 0.0
        %965 = vmatprep.subr.mxu0 0.0
        %966 = vmatpush1.xpose.msra.mxu0 0.0
        %967 = vmatprep.subr.mxu0 0.0
        %968 = vmatpush1.xpose.msra.mxu0 0.0
        %969 = vmatprep.subr.mxu0 0.0
        %970 = vmatpush1.xpose.msra.mxu0 0.0
        %971 = vmatprep.subr.mxu0 0.0
        %972 = vmatpush1.xpose.msra.mxu0 0.0
        %973 = vmatprep.subr.mxu0 0.0
        %974 = vmatpush1.xpose.msra.mxu0 0.0
        %975 = vmatprep.subr.mxu0 0.0
        %976 = vmatpush1.xpose.msra.mxu0 0.0
        %977 = vmatprep.subr.mxu0 0.0
        %978 = vmatpush1.xpose.msra.mxu0 0.0
        %979 = vmatprep.subr.mxu0 0.0
        %980 = vmatpush1.xpose.msra.mxu0 0.0
        %981 = vmatprep.subr.mxu0 0.0
        %982 = vmatpush1.xpose.msra.mxu0 0.0
        %983 = vmatprep.subr.mxu0 0.0
        %984 = vmatpush1.xpose.msra.mxu0 0.0
        %985 = vmatprep.subr.mxu0 0.0
        %986 = vmatpush1.xpose.msra.mxu0 0.0
        %987 = vmatprep.subr.mxu0 0.0
        %988 = vmatpush1.xpose.msra.mxu0 0.0
        %989 = vmatprep.subr.mxu0 0.0
        %990 = vmatpush1.xpose.msra.mxu0 0.0
        %991 = vmatprep.subr.mxu0 0.0
        %992 = vmatpush1.xpose.msra.mxu0 0.0
        %993 = vmatprep.mubr.f32.mxu0 0.0
        %994 = vmatmul.mubr.f32.gmra.mrb[0].mxu0 %v921
        %v995 = vpop.f32.mrb[0].mxu0
        %v996 = vadd.f32 %v815, %v995
        %v997 = vpop.f32.mrb[0].mxu0
        %998 = vmatprep.mubr.f32.mxu0 0.0
        %999 = vmatmul.mubr.f32.gmra.mrb[0].mxu0 %v923
        %v1000 = vpop.f32.mrb[0].mxu0
        %v1001 = vadd.f32 %v816, %v1000
        %v1002 = vpop.f32.mrb[0].mxu0
        %1003 = vdwg.mxu0
        %vm1004 = vcmask 130048
        %v1005 = vsel %vm1004, %v996, -inf
        %1006 = vmax.xlane.f32.xlu0 %v1005
        %v1007 = vpop.xlane.xlu0 %1006
        %v1008 = vsel %vm1004, %v1001, -inf
        %1009 = vmax.xlane.f32.xlu0 %v1008
        %v1010 = vpop.xlane.xlu0 %1009
        %v1011 = vsub.f32 %v996, %v1007
        %v1012 = vsub.f32 %v1001, %v1010
        %v1013 = vmul.f32 %v1011, 1.442695
        %v1014 = vpow.pop %v1013
        %v1015 = vmul.f32 %v1012, 1.442695
        %v1016 = vpow.pop %v1015
        %v1017 = vsel %vm1004, %v1014, 0.0
        %1018 = vadd.xlane.f32.xlu0 %v1017
        %v1019 = vpop.xlane.xlu0 %1018
        %v1020 = vsel %vm1004, %v1016, 0.0
        %1021 = vadd.xlane.f32.xlu0 %v1020
        %v1022 = vpop.xlane.xlu0 %1021
        %v1023 = vrcp.pop %v1019
        %v1024 = vmul.f32 %v1014, %v1023
        %v1025 = vrcp.pop %v1022
        %v1026 = vmul.f32 %v1016, %v1025
        %1027 = vrot.lane.b32.xlu0 %v902, 64
        %v1028 = vpop.permute.xlu0 %1027
        %1029 = vrot.lane.b32.xlu0 %v907, 64
        %v1030 = vpop.permute.xlu0 %1029
        %v1034 = vsel %vm1004, %v1024, 0
        %v1037 = vsel %vm1004, %v1026, 0
        %1039 = vmatprep.subr.mxu0 0.0
        %1040 = vmatpush1.msra.mxu0 %v1028
        %1041 = vmatprep.subr.mxu0 0.0
        %1042 = vmatpush1.msra.mxu0 %v1030
        %1043 = vmatprep.subr.mxu0 0.0
        %1044 = vmatpush1.msra.mxu0 0.0
        %1045 = vmatprep.subr.mxu0 0.0
        %1046 = vmatpush1.msra.mxu0 0.0
        %1047 = vmatprep.subr.mxu0 0.0
        %1048 = vmatpush1.msra.mxu0 0.0
        %1049 = vmatprep.subr.mxu0 0.0
        %1050 = vmatpush1.msra.mxu0 0.0
        %1051 = vmatprep.subr.mxu0 0.0
        %1052 = vmatpush1.msra.mxu0 0.0
        %1053 = vmatprep.subr.mxu0 0.0
        %1054 = vmatpush1.msra.mxu0 0.0
        %1055 = vmatprep.subr.mxu0 0.0
        %1056 = vmatpush1.msra.mxu0 0.0
        %1057 = vmatprep.subr.mxu0 0.0
        %1058 = vmatpush1.msra.mxu0 0.0
        %1059 = vmatprep.subr.mxu0 0.0
        %1060 = vmatpush1.msra.mxu0 0.0
        %1061 = vmatprep.subr.mxu0 0.0
        %1062 = vmatpush1.msra.mxu0 0.0
        %1063 = vmatprep.subr.mxu0 0.0
        %1064 = vmatpush1.msra.mxu0 0.0
        %1065 = vmatprep.subr.mxu0 0.0
        %1066 = vmatpush1.msra.mxu0 0.0
        %1067 = vmatprep.subr.mxu0 0.0
        %1068 = vmatpush1.msra.mxu0 0.0
        %1069 = vmatprep.subr.mxu0 0.0
        %1070 = vmatpush1.msra.mxu0 0.0
        %1071 = vmatprep.subr.mxu0 0.0
        %1072 = vmatpush1.msra.mxu0 0.0
        %1073 = vmatprep.subr.mxu0 0.0
        %1074 = vmatpush1.msra.mxu0 0.0
        %1075 = vmatprep.subr.mxu0 0.0
        %1076 = vmatpush1.msra.mxu0 0.0
        %1077 = vmatprep.subr.mxu0 0.0
        %1078 = vmatpush1.msra.mxu0 0.0
        %1079 = vmatprep.subr.mxu0 0.0
        %1080 = vmatpush1.msra.mxu0 0.0
        %1081 = vmatprep.subr.mxu0 0.0
        %1082 = vmatpush1.msra.mxu0 0.0
        %1083 = vmatprep.subr.mxu0 0.0
        %1084 = vmatpush1.msra.mxu0 0.0
        %1085 = vmatprep.subr.mxu0 0.0
        %1086 = vmatpush1.msra.mxu0 0.0
        %1087 = vmatprep.subr.mxu0 0.0
        %1088 = vmatpush1.msra.mxu0 0.0
        %1089 = vmatprep.subr.mxu0 0.0
        %1090 = vmatpush1.msra.mxu0 0.0
        %1091 = vmatprep.subr.mxu0 0.0
        %1092 = vmatpush1.msra.mxu0 0.0
        %1093 = vmatprep.subr.mxu0 0.0
        %1094 = vmatpush1.msra.mxu0 0.0
        %1095 = vmatprep.subr.mxu0 0.0
        %1096 = vmatpush1.msra.mxu0 0.0
        %1097 = vmatprep.subr.mxu0 0.0
        %1098 = vmatpush1.msra.mxu0 0.0
        %1099 = vmatprep.subr.mxu0 0.0
        %1100 = vmatpush1.msra.mxu0 0.0
        %1101 = vmatprep.subr.mxu0 0.0
        %1102 = vmatpush1.msra.mxu0 0.0
        %1103 = vmatprep.mubr.f32.mxu0 0.0
        %1104 = vmatmul.mubr.f32.gmra.mrb[0].mxu0 %v1034
        %v1105 = vpop.f32.mrb[0].mxu0
        %v1106 = vadd.f32 0.0, %v1105
        %v1107 = vpop.f32.mrb[0].mxu0
        %1108 = vmatprep.mubr.f32.mxu0 0.0
        %1109 = vmatmul.mubr.f32.gmra.mrb[0].mxu0 %v1037
        %v1110 = vpop.f32.mrb[0].mxu0
        %v1111 = vadd.f32 0.0, %v1110
        %v1112 = vpop.f32.mrb[0].mxu0
        %1113 = vdwg.mxu0
        %1114 = vrot.lane.b32.xlu0 %v902, 120
        %v1115 = vpop.permute.xlu0 %1114
        %1116 = vrot.lane.b32.xlu0 %v907, 120
        %v1117 = vpop.permute.xlu0 %1116
        %1118 = vrot.lane.b32.xlu0 %v902, 88
        %v1119 = vpop.permute.xlu0 %1118
        %1120 = vrot.lane.b32.xlu0 %v907, 88
        %v1121 = vpop.permute.xlu0 %1120
        %v1122 = vsel %vm920, %v1115, 0
        %v1124 = vsel %vm920, %v1117, 0
        %v1126 = vsel %vm920, %v1119, 0
        %v1128 = vsel %vm920, %v1121, 0
        %1130 = vmatprep.subr.mxu0 0.0
        %1131 = vmatpush1.xpose.msra.mxu0 %v1126
        %1132 = vmatprep.subr.mxu0 0.0
        %1133 = vmatpush1.xpose.msra.mxu0 %v1128
        %1134 = vmatprep.subr.mxu0 0.0
        %1135 = vmatpush1.xpose.msra.mxu0 0.0
        %1136 = vmatprep.subr.mxu0 0.0
        %1137 = vmatpush1.xpose.msra.mxu0 0.0
        %1138 = vmatprep.subr.mxu0 0.0
        %1139 = vmatpush1.xpose.msra.mxu0 0.0
        %1140 = vmatprep.subr.mxu0 0.0
        %1141 = vmatpush1.xpose.msra.mxu0 0.0
        %1142 = vmatprep.subr.mxu0 0.0
        %1143 = vmatpush1.xpose.msra.mxu0 0.0
        %1144 = vmatprep.subr.mxu0 0.0
        %1145 = vmatpush1.xpose.msra.mxu0 0.0
        %1146 = vmatprep.subr.mxu0 0.0
        %1147 = vmatpush1.xpose.msra.mxu0 0.0
        %1148 = vmatprep.subr.mxu0 0.0
        %1149 = vmatpush1.xpose.msra.mxu0 0.0
        %1150 = vmatprep.subr.mxu0 0.0
        %1151 = vmatpush1.xpose.msra.mxu0 0.0
        %1152 = vmatprep.subr.mxu0 0.0
        %1153 = vmatpush1.xpose.msra.mxu0 0.0
        %1154 = vmatprep.subr.mxu0 0.0
        %1155 = vmatpush1.xpose.msra.mxu0 0.0
        %1156 = vmatprep.subr.mxu0 0.0
        %1157 = vmatpush1.xpose.msra.mxu0 0.0
        %1158 = vmatprep.subr.mxu0 0.0
        %1159 = vmatpush1.xpose.msra.mxu0 0.0
        %1160 = vmatprep.subr.mxu0 0.0
        %1161 = vmatpush1.xpose.msra.mxu0 0.0
        %1162 = vmatprep.subr.mxu0 0.0
        %1163 = vmatpush1.xpose.msra.mxu0 0.0
        %1164 = vmatprep.subr.mxu0 0.0
        %1165 = vmatpush1.xpose.msra.mxu0 0.0
        %1166 = vmatprep.subr.mxu0 0.0
        %1167 = vmatpush1.xpose.msra.mxu0 0.0
        %1168 = vmatprep.subr.mxu0 0.0
        %1169 = vmatpush1.xpose.msra.mxu0 0.0
        %1170 = vmatprep.subr.mxu0 0.0
        %1171 = vmatpush1.xpose.msra.mxu0 0.0
        %1172 = vmatprep.subr.mxu0 0.0
        %1173 = vmatpush1.xpose.msra.mxu0 0.0
        %1174 = vmatprep.subr.mxu0 0.0
        %1175 = vmatpush1.xpose.msra.mxu0 0.0
        %1176 = vmatprep.subr.mxu0 0.0
        %1177 = vmatpush1.xpose.msra.mxu0 0.0
        %1178 = vmatprep.subr.mxu0 0.0
        %1179 = vmatpush1.xpose.msra.mxu0 0.0
        %1180 = vmatprep.subr.mxu0 0.0
        %1181 = vmatpush1.xpose.msra.mxu0 0.0
        %1182 = vmatprep.subr.mxu0 0.0
        %1183 = vmatpush1.xpose.msra.mxu0 0.0
        %1184 = vmatprep.subr.mxu0 0.0
        %1185 = vmatpush1.xpose.msra.mxu0 0.0
        %1186 = vmatprep.subr.mxu0 0.0
        %1187 = vmatpush1.xpose.msra.mxu0 0.0
        %1188 = vmatprep.subr.mxu0 0.0
        %1189 = vmatpush1.xpose.msra.mxu0 0.0
        %1190 = vmatprep.subr.mxu0 0.0
        %1191 = vmatpush1.xpose.msra.mxu0 0.0
        %1192 = vmatprep.subr.mxu0 0.0
        %1193 = vmatpush1.xpose.msra.mxu0 0.0
        %1194 = vmatprep.mubr.f32.mxu0 0.0
        %1195 = vmatmul.mubr.f32.gmra.mrb[0].mxu0 %v1122
        %v1196 = vpop.f32.mrb[0].mxu0
        %v1197 = vadd.f32 %v815, %v1196
        %v1198 = vpop.f32.mrb[0].mxu0
        %1199 = vmatprep.mubr.f32.mxu0 0.0
        %1200 = vmatmul.mubr.f32.gmra.mrb[0].mxu0 %v1124
        %v1201 = vpop.f32.mrb[0].mxu0
        %v1202 = vadd.f32 %v816, %v1201
        %v1203 = vpop.f32.mrb[0].mxu0
        %1204 = vdwg.mxu0
        %v1205 = vsel %vm1004, %v1197, -inf
        %1206 = vmax.xlane.f32.xlu0 %v1205
        %v1207 = vpop.xlane.xlu0 %1206
        %v1208 = vsel %vm1004, %v1202, -inf
        %1209 = vmax.xlane.f32.xlu0 %v1208
        %v1210 = vpop.xlane.xlu0 %1209
        %v1211 = vsub.f32 %v1197, %v1207
        %v1212 = vsub.f32 %v1202, %v1210
        %v1213 = vmul.f32 %v1211, 1.442695
        %v1214 = vpow.pop %v1213
        %v1215 = vmul.f32 %v1212, 1.442695
        %v1216 = vpow.pop %v1215
        %v1217 = vsel %vm1004, %v1214, 0.0
        %1218 = vadd.xlane.f32.xlu0 %v1217
        %v1219 = vpop.xlane.xlu0 %1218
        %v1220 = vsel %vm1004, %v1216, 0.0
        %1221 = vadd.xlane.f32.xlu0 %v1220
        %v1222 = vpop.xlane.xlu0 %1221
        %v1223 = vrcp.pop %v1219
        %v1224 = vmul.f32 %v1214, %v1223
        %v1225 = vrcp.pop %v1222
        %v1226 = vmul.f32 %v1216, %v1225
        %1227 = vrot.lane.b32.xlu0 %v902, 56
        %v1228 = vpop.permute.xlu0 %1227
        %1229 = vrot.lane.b32.xlu0 %v907, 56
        %v1230 = vpop.permute.xlu0 %1229
        %v1234 = vsel %vm1004, %v1224, 0
        %v1237 = vsel %vm1004, %v1226, 0
        %1239 = vmatprep.subr.mxu0 0.0
        %1240 = vmatpush1.msra.mxu0 %v1228
        %1241 = vmatprep.subr.mxu0 0.0
        %1242 = vmatpush1.msra.mxu0 %v1230
        %1243 = vmatprep.subr.mxu0 0.0
        %1244 = vmatpush1.msra.mxu0 0.0
        %1245 = vmatprep.subr.mxu0 0.0
        %1246 = vmatpush1.msra.mxu0 0.0
        %1247 = vmatprep.subr.mxu0 0.0
        %1248 = vmatpush1.msra.mxu0 0.0
        %1249 = vmatprep.subr.mxu0 0.0
        %1250 = vmatpush1.msra.mxu0 0.0
        %1251 = vmatprep.subr.mxu0 0.0
        %1252 = vmatpush1.msra.mxu0 0.0
        %1253 = vmatprep.subr.mxu0 0.0
        %1254 = vmatpush1.msra.mxu0 0.0
        %1255 = vmatprep.subr.mxu0 0.0
        %1256 = vmatpush1.msra.mxu0 0.0
        %1257 = vmatprep.subr.mxu0 0.0
        %1258 = vmatpush1.msra.mxu0 0.0
        %1259 = vmatprep.subr.mxu0 0.0
        %1260 = vmatpush1.msra.mxu0 0.0
        %1261 = vmatprep.subr.mxu0 0.0
        %1262 = vmatpush1.msra.mxu0 0.0
        %1263 = vmatprep.subr.mxu0 0.0
        %1264 = vmatpush1.msra.mxu0 0.0
        %1265 = vmatprep.subr.mxu0 0.0
        %1266 = vmatpush1.msra.mxu0 0.0
        %1267 = vmatprep.subr.mxu0 0.0
        %1268 = vmatpush1.msra.mxu0 0.0
        %1269 = vmatprep.subr.mxu0 0.0
        %1270 = vmatpush1.msra.mxu0 0.0
        %1271 = vmatprep.subr.mxu0 0.0
        %1272 = vmatpush1.msra.mxu0 0.0
        %1273 = vmatprep.subr.mxu0 0.0
        %1274 = vmatpush1.msra.mxu0 0.0
        %1275 = vmatprep.subr.mxu0 0.0
        %1276 = vmatpush1.msra.mxu0 0.0
        %1277 = vmatprep.subr.mxu0 0.0
        %1278 = vmatpush1.msra.mxu0 0.0
        %1279 = vmatprep.subr.mxu0 0.0
        %1280 = vmatpush1.msra.mxu0 0.0
        %1281 = vmatprep.subr.mxu0 0.0
        %1282 = vmatpush1.msra.mxu0 0.0
        %1283 = vmatprep.subr.mxu0 0.0
        %1284 = vmatpush1.msra.mxu0 0.0
        %1285 = vmatprep.subr.mxu0 0.0
        %1286 = vmatpush1.msra.mxu0 0.0
        %1287 = vmatprep.subr.mxu0 0.0
        %1288 = vmatpush1.msra.mxu0 0.0
        %1289 = vmatprep.subr.mxu0 0.0
        %1290 = vmatpush1.msra.mxu0 0.0
        %1291 = vmatprep.subr.mxu0 0.0
        %1292 = vmatpush1.msra.mxu0 0.0
        %1293 = vmatprep.subr.mxu0 0.0
        %1294 = vmatpush1.msra.mxu0 0.0
        %1295 = vmatprep.subr.mxu0 0.0
        %1296 = vmatpush1.msra.mxu0 0.0
        %1297 = vmatprep.subr.mxu0 0.0
        %1298 = vmatpush1.msra.mxu0 0.0
        %1299 = vmatprep.subr.mxu0 0.0
        %1300 = vmatpush1.msra.mxu0 0.0
        %1301 = vmatprep.subr.mxu0 0.0
        %1302 = vmatpush1.msra.mxu0 0.0
        %1303 = vmatprep.mubr.f32.mxu0 0.0
        %1304 = vmatmul.mubr.f32.gmra.mrb[0].mxu0 %v1234
        %v1305 = vpop.f32.mrb[0].mxu0
        %v1306 = vadd.f32 0.0, %v1305
        %v1307 = vpop.f32.mrb[0].mxu0
        %1308 = vmatprep.mubr.f32.mxu0 0.0
        %1309 = vmatmul.mubr.f32.gmra.mrb[0].mxu0 %v1237
        %v1310 = vpop.f32.mrb[0].mxu0
        %v1311 = vadd.f32 0.0, %v1310
        %v1312 = vpop.f32.mrb[0].mxu0
        %1313 = vdwg.mxu0
        %v1315 = vsel %vm920, %v1306, 0
        %v1318 = vsel %vm920, %v1311, 0
        %1320 = vmatprep.subr.mxu0 0.0
        %1321 = vmatpush1.msra.mxu0 %v911
        %1322 = vmatprep.subr.mxu0 0.0
        %1323 = vmatpush1.msra.mxu0 0.0
        %1324 = vmatprep.subr.mxu0 0.0
        %1325 = vmatpush1.msra.mxu0 0.0
        %1326 = vmatprep.subr.mxu0 0.0
        %1327 = vmatpush1.msra.mxu0 0.0
        %1328 = vmatprep.subr.mxu0 0.0
        %1329 = vmatpush1.msra.mxu0 0.0
        %1330 = vmatprep.subr.mxu0 0.0
        %1331 = vmatpush1.msra.mxu0 0.0
        %1332 = vmatprep.subr.mxu0 0.0
        %1333 = vmatpush1.msra.mxu0 0.0
        %1334 = vmatprep.subr.mxu0 0.0
        %1335 = vmatpush1.msra.mxu0 0.0
        %1336 = vmatprep.subr.mxu0 0.0
        %1337 = vmatpush1.msra.mxu0 0.0
        %1338 = vmatprep.subr.mxu0 0.0
        %1339 = vmatpush1.msra.mxu0 0.0
        %1340 = vmatprep.subr.mxu0 0.0
        %1341 = vmatpush1.msra.mxu0 0.0
        %1342 = vmatprep.subr.mxu0 0.0
        %1343 = vmatpush1.msra.mxu0 0.0
        %1344 = vmatprep.subr.mxu0 0.0
        %1345 = vmatpush1.msra.mxu0 0.0
        %1346 = vmatprep.subr.mxu0 0.0
        %1347 = vmatpush1.msra.mxu0 0.0
        %1348 = vmatprep.subr.mxu0 0.0
        %1349 = vmatpush1.msra.mxu0 0.0
        %1350 = vmatprep.subr.mxu0 0.0
        %1351 = vmatpush1.msra.mxu0 0.0
        %1352 = vmatprep.subr.mxu0 0.0
        %1353 = vmatpush1.msra.mxu0 0.0
        %1354 = vmatprep.subr.mxu0 0.0
        %1355 = vmatpush1.msra.mxu0 0.0
        %1356 = vmatprep.subr.mxu0 0.0
        %1357 = vmatpush1.msra.mxu0 0.0
        %1358 = vmatprep.subr.mxu0 0.0
        %1359 = vmatpush1.msra.mxu0 0.0
        %1360 = vmatprep.subr.mxu0 0.0
        %1361 = vmatpush1.msra.mxu0 0.0
        %1362 = vmatprep.subr.mxu0 0.0
        %1363 = vmatpush1.msra.mxu0 0.0
        %1364 = vmatprep.subr.mxu0 0.0
        %1365 = vmatpush1.msra.mxu0 0.0
        %1366 = vmatprep.subr.mxu0 0.0
        %1367 = vmatpush1.msra.mxu0 0.0
        %1368 = vmatprep.subr.mxu0 0.0
        %1369 = vmatpush1.msra.mxu0 0.0
        %1370 = vmatprep.subr.mxu0 0.0
        %1371 = vmatpush1.msra.mxu0 0.0
        %1372 = vmatprep.subr.mxu0 0.0
        %1373 = vmatpush1.msra.mxu0 0.0
        %1374 = vmatprep.subr.mxu0 0.0
        %1375 = vmatpush1.msra.mxu0 0.0
        %1376 = vmatprep.subr.mxu0 0.0
        %1377 = vmatpush1.msra.mxu0 0.0
        %1378 = vmatprep.subr.mxu0 0.0
        %1379 = vmatpush1.msra.mxu0 0.0
        %1380 = vmatprep.subr.mxu0 0.0
        %1381 = vmatpush1.msra.mxu0 0.0
        %1382 = vmatprep.subr.mxu0 0.0
        %1383 = vmatpush1.msra.mxu0 0.0
        %1384 = vmatprep.mubr.f32.mxu0 0.0
        %1385 = vmatmul.mubr.f32.gmra.mrb[0].mxu0 %v1315
        %v1386 = vpop.f32.mrb[0].mxu0
        %v1387 = vadd.f32 0.0, %v1386
        %v1388 = vpop.f32.mrb[0].mxu0
        %1389 = vmatprep.mubr.f32.mxu0 0.0
        %1390 = vmatmul.mubr.f32.gmra.mrb[0].mxu0 %v1318
        %v1391 = vpop.f32.mrb[0].mxu0
        %v1392 = vadd.f32 0.0, %v1391
        %v1393 = vpop.f32.mrb[0].mxu0
        %1394 = vdwg.mxu0
        %v1396 = vsel %vm920, %v1106, 0
        %v1399 = vsel %vm920, %v1111, 0
        %1401 = vmatprep.subr.mxu0 0.0
        %1402 = vmatpush1.msra.mxu0 %v910
        %1403 = vmatprep.subr.mxu0 0.0
        %1404 = vmatpush1.msra.mxu0 0.0
        %1405 = vmatprep.subr.mxu0 0.0
        %1406 = vmatpush1.msra.mxu0 0.0
        %1407 = vmatprep.subr.mxu0 0.0
        %1408 = vmatpush1.msra.mxu0 0.0
        %1409 = vmatprep.subr.mxu0 0.0
        %1410 = vmatpush1.msra.mxu0 0.0
        %1411 = vmatprep.subr.mxu0 0.0
        %1412 = vmatpush1.msra.mxu0 0.0
        %1413 = vmatprep.subr.mxu0 0.0
        %1414 = vmatpush1.msra.mxu0 0.0
        %1415 = vmatprep.subr.mxu0 0.0
        %1416 = vmatpush1.msra.mxu0 0.0
        %1417 = vmatprep.subr.mxu0 0.0
        %1418 = vmatpush1.msra.mxu0 0.0
        %1419 = vmatprep.subr.mxu0 0.0
        %1420 = vmatpush1.msra.mxu0 0.0
        %1421 = vmatprep.subr.mxu0 0.0
        %1422 = vmatpush1.msra.mxu0 0.0
        %1423 = vmatprep.subr.mxu0 0.0
        %1424 = vmatpush1.msra.mxu0 0.0
        %1425 = vmatprep.subr.mxu0 0.0
        %1426 = vmatpush1.msra.mxu0 0.0
        %1427 = vmatprep.subr.mxu0 0.0
        %1428 = vmatpush1.msra.mxu0 0.0
        %1429 = vmatprep.subr.mxu0 0.0
        %1430 = vmatpush1.msra.mxu0 0.0
        %1431 = vmatprep.subr.mxu0 0.0
        %1432 = vmatpush1.msra.mxu0 0.0
        %1433 = vmatprep.subr.mxu0 0.0
        %1434 = vmatpush1.msra.mxu0 0.0
        %1435 = vmatprep.subr.mxu0 0.0
        %1436 = vmatpush1.msra.mxu0 0.0
        %1437 = vmatprep.subr.mxu0 0.0
        %1438 = vmatpush1.msra.mxu0 0.0
        %1439 = vmatprep.subr.mxu0 0.0
        %1440 = vmatpush1.msra.mxu0 0.0
        %1441 = vmatprep.subr.mxu0 0.0
        %1442 = vmatpush1.msra.mxu0 0.0
        %1443 = vmatprep.subr.mxu0 0.0
        %1444 = vmatpush1.msra.mxu0 0.0
        %1445 = vmatprep.subr.mxu0 0.0
        %1446 = vmatpush1.msra.mxu0 0.0
        %1447 = vmatprep.subr.mxu0 0.0
        %1448 = vmatpush1.msra.mxu0 0.0
        %1449 = vmatprep.subr.mxu0 0.0
        %1450 = vmatpush1.msra.mxu0 0.0
        %1451 = vmatprep.subr.mxu0 0.0
        %1452 = vmatpush1.msra.mxu0 0.0
        %1453 = vmatprep.subr.mxu0 0.0
        %1454 = vmatpush1.msra.mxu0 0.0
        %1455 = vmatprep.subr.mxu0 0.0
        %1456 = vmatpush1.msra.mxu0 0.0
        %1457 = vmatprep.subr.mxu0 0.0
        %1458 = vmatpush1.msra.mxu0 0.0
        %1459 = vmatprep.subr.mxu0 0.0
        %1460 = vmatpush1.msra.mxu0 0.0
        %1461 = vmatprep.subr.mxu0 0.0
        %1462 = vmatpush1.msra.mxu0 0.0
        %1463 = vmatprep.subr.mxu0 0.0
        %1464 = vmatpush1.msra.mxu0 0.0
        %1465 = vmatprep.mubr.f32.mxu0 0.0
        %1466 = vmatmul.mubr.f32.gmra.mrb[0].mxu0 %v1396
        %v1467 = vpop.f32.mrb[0].mxu0
        %v1468 = vadd.f32 %v1387, %v1467
        %v1469 = vpop.f32.mrb[0].mxu0
        %1470 = vmatprep.mubr.f32.mxu0 0.0
        %1471 = vmatmul.mubr.f32.gmra.mrb[0].mxu0 %v1399
        %v1472 = vpop.f32.mrb[0].mxu0
        %v1473 = vadd.f32 %v1392, %v1472
        %v1474 = vpop.f32.mrb[0].mxu0
        %1475 = vdwg.mxu0
        %1476 = vrot.lane.b32.xlu0 %v902, 112
        %v1477 = vpop.permute.xlu0 %1476
        %1478 = vrot.lane.b32.xlu0 %v907, 112
        %v1479 = vpop.permute.xlu0 %1478
        %1480 = vrot.lane.b32.xlu0 %v902, 80
        %v1481 = vpop.permute.xlu0 %1480
        %1482 = vrot.lane.b32.xlu0 %v907, 80
        %v1483 = vpop.permute.xlu0 %1482
        %v1484 = vsel %vm920, %v1477, 0
        %v1486 = vsel %vm920, %v1479, 0
        %v1488 = vsel %vm920, %v1481, 0
        %v1490 = vsel %vm920, %v1483, 0
        %1492 = vmatprep.subr.mxu0 0.0
        %1493 = vmatpush1.xpose.msra.mxu0 %v1488
        %1494 = vmatprep.subr.mxu0 0.0
        %1495 = vmatpush1.xpose.msra.mxu0 %v1490
        %1496 = vmatprep.subr.mxu0 0.0
        %1497 = vmatpush1.xpose.msra.mxu0 0.0
        %1498 = vmatprep.subr.mxu0 0.0
        %1499 = vmatpush1.xpose.msra.mxu0 0.0
        %1500 = vmatprep.subr.mxu0 0.0
        %1501 = vmatpush1.xpose.msra.mxu0 0.0
        %1502 = vmatprep.subr.mxu0 0.0
        %1503 = vmatpush1.xpose.msra.mxu0 0.0
        %1504 = vmatprep.subr.mxu0 0.0
        %1505 = vmatpush1.xpose.msra.mxu0 0.0
        %1506 = vmatprep.subr.mxu0 0.0
        %1507 = vmatpush1.xpose.msra.mxu0 0.0
        %1508 = vmatprep.subr.mxu0 0.0
        %1509 = vmatpush1.xpose.msra.mxu0 0.0
        %1510 = vmatprep.subr.mxu0 0.0
        %1511 = vmatpush1.xpose.msra.mxu0 0.0
        %1512 = vmatprep.subr.mxu0 0.0
        %1513 = vmatpush1.xpose.msra.mxu0 0.0
        %1514 = vmatprep.subr.mxu0 0.0
        %1515 = vmatpush1.xpose.msra.mxu0 0.0
        %1516 = vmatprep.subr.mxu0 0.0
        %1517 = vmatpush1.xpose.msra.mxu0 0.0
        %1518 = vmatprep.subr.mxu0 0.0
        %1519 = vmatpush1.xpose.msra.mxu0 0.0
        %1520 = vmatprep.subr.mxu0 0.0
        %1521 = vmatpush1.xpose.msra.mxu0 0.0
        %1522 = vmatprep.subr.mxu0 0.0
        %1523 = vmatpush1.xpose.msra.mxu0 0.0
        %1524 = vmatprep.subr.mxu0 0.0
        %1525 = vmatpush1.xpose.msra.mxu0 0.0
        %1526 = vmatprep.subr.mxu0 0.0
        %1527 = vmatpush1.xpose.msra.mxu0 0.0
        %1528 = vmatprep.subr.mxu0 0.0
        %1529 = vmatpush1.xpose.msra.mxu0 0.0
        %1530 = vmatprep.subr.mxu0 0.0
        %1531 = vmatpush1.xpose.msra.mxu0 0.0
        %1532 = vmatprep.subr.mxu0 0.0
        %1533 = vmatpush1.xpose.msra.mxu0 0.0
        %1534 = vmatprep.subr.mxu0 0.0
        %1535 = vmatpush1.xpose.msra.mxu0 0.0
        %1536 = vmatprep.subr.mxu0 0.0
        %1537 = vmatpush1.xpose.msra.mxu0 0.0
        %1538 = vmatprep.subr.mxu0 0.0
        %1539 = vmatpush1.xpose.msra.mxu0 0.0
        %1540 = vmatprep.subr.mxu0 0.0
        %1541 = vmatpush1.xpose.msra.mxu0 0.0
        %1542 = vmatprep.subr.mxu0 0.0
        %1543 = vmatpush1.xpose.msra.mxu0 0.0
        %1544 = vmatprep.subr.mxu0 0.0
        %1545 = vmatpush1.xpose.msra.mxu0 0.0
        %1546 = vmatprep.subr.mxu0 0.0
        %1547 = vmatpush1.xpose.msra.mxu0 0.0
        %1548 = vmatprep.subr.mxu0 0.0
        %1549 = vmatpush1.xpose.msra.mxu0 0.0
        %1550 = vmatprep.subr.mxu0 0.0
        %1551 = vmatpush1.xpose.msra.mxu0 0.0
        %1552 = vmatprep.subr.mxu0 0.0
        %1553 = vmatpush1.xpose.msra.mxu0 0.0
        %1554 = vmatprep.subr.mxu0 0.0
        %1555 = vmatpush1.xpose.msra.mxu0 0.0
        %1556 = vmatprep.mubr.f32.mxu0 0.0
        %1557 = vmatmul.mubr.f32.gmra.mrb[0].mxu0 %v1484
        %v1558 = vpop.f32.mrb[0].mxu0
        %v1559 = vadd.f32 %v815, %v1558
        %v1560 = vpop.f32.mrb[0].mxu0
        %1561 = vmatprep.mubr.f32.mxu0 0.0
        %1562 = vmatmul.mubr.f32.gmra.mrb[0].mxu0 %v1486
        %v1563 = vpop.f32.mrb[0].mxu0
        %v1564 = vadd.f32 %v816, %v1563
        %v1565 = vpop.f32.mrb[0].mxu0
        %1566 = vdwg.mxu0
        %v1567 = vsel %vm1004, %v1559, -inf
        %1568 = vmax.xlane.f32.xlu0 %v1567
        %v1569 = vpop.xlane.xlu0 %1568
        %v1570 = vsel %vm1004, %v1564, -inf
        %1571 = vmax.xlane.f32.xlu0 %v1570
        %v1572 = vpop.xlane.xlu0 %1571
        %v1573 = vsub.f32 %v1559, %v1569
        %v1574 = vsub.f32 %v1564, %v1572
        %v1575 = vmul.f32 %v1573, 1.442695
        %v1576 = vpow.pop %v1575
        %v1577 = vmul.f32 %v1574, 1.442695
        %v1578 = vpow.pop %v1577
        %v1579 = vsel %vm1004, %v1576, 0.0
        %1580 = vadd.xlane.f32.xlu0 %v1579
        %v1581 = vpop.xlane.xlu0 %1580
        %v1582 = vsel %vm1004, %v1578, 0.0
        %1583 = vadd.xlane.f32.xlu0 %v1582
        %v1584 = vpop.xlane.xlu0 %1583
        %v1585 = vrcp.pop %v1581
        %v1586 = vmul.f32 %v1576, %v1585
        %v1587 = vrcp.pop %v1584
        %v1588 = vmul.f32 %v1578, %v1587
        %1589 = vrot.lane.b32.xlu0 %v902, 48
        %v1590 = vpop.permute.xlu0 %1589
        %1591 = vrot.lane.b32.xlu0 %v907, 48
        %v1592 = vpop.permute.xlu0 %1591
        %v1596 = vsel %vm1004, %v1586, 0
        %v1599 = vsel %vm1004, %v1588, 0
        %1601 = vmatprep.subr.mxu0 0.0
        %1602 = vmatpush1.msra.mxu0 %v1590
        %1603 = vmatprep.subr.mxu0 0.0
        %1604 = vmatpush1.msra.mxu0 %v1592
        %1605 = vmatprep.subr.mxu0 0.0
        %1606 = vmatpush1.msra.mxu0 0.0
        %1607 = vmatprep.subr.mxu0 0.0
        %1608 = vmatpush1.msra.mxu0 0.0
        %1609 = vmatprep.subr.mxu0 0.0
        %1610 = vmatpush1.msra.mxu0 0.0
        %1611 = vmatprep.subr.mxu0 0.0
        %1612 = vmatpush1.msra.mxu0 0.0
        %1613 = vmatprep.subr.mxu0 0.0
        %1614 = vmatpush1.msra.mxu0 0.0
        %1615 = vmatprep.subr.mxu0 0.0
        %1616 = vmatpush1.msra.mxu0 0.0
        %1617 = vmatprep.subr.mxu0 0.0
        %1618 = vmatpush1.msra.mxu0 0.0
        %1619 = vmatprep.subr.mxu0 0.0
        %1620 = vmatpush1.msra.mxu0 0.0
        %1621 = vmatprep.subr.mxu0 0.0
        %1622 = vmatpush1.msra.mxu0 0.0
        %1623 = vmatprep.subr.mxu0 0.0
        %1624 = vmatpush1.msra.mxu0 0.0
        %1625 = vmatprep.subr.mxu0 0.0
        %1626 = vmatpush1.msra.mxu0 0.0
        %1627 = vmatprep.subr.mxu0 0.0
        %1628 = vmatpush1.msra.mxu0 0.0
        %1629 = vmatprep.subr.mxu0 0.0
        %1630 = vmatpush1.msra.mxu0 0.0
        %1631 = vmatprep.subr.mxu0 0.0
        %1632 = vmatpush1.msra.mxu0 0.0
        %1633 = vmatprep.subr.mxu0 0.0
        %1634 = vmatpush1.msra.mxu0 0.0
        %1635 = vmatprep.subr.mxu0 0.0
        %1636 = vmatpush1.msra.mxu0 0.0
        %1637 = vmatprep.subr.mxu0 0.0
        %1638 = vmatpush1.msra.mxu0 0.0
        %1639 = vmatprep.subr.mxu0 0.0
        %1640 = vmatpush1.msra.mxu0 0.0
        %1641 = vmatprep.subr.mxu0 0.0
        %1642 = vmatpush1.msra.mxu0 0.0
        %1643 = vmatprep.subr.mxu0 0.0
        %1644 = vmatpush1.msra.mxu0 0.0
        %1645 = vmatprep.subr.mxu0 0.0
        %1646 = vmatpush1.msra.mxu0 0.0
        %1647 = vmatprep.subr.mxu0 0.0
        %1648 = vmatpush1.msra.mxu0 0.0
        %1649 = vmatprep.subr.mxu0 0.0
        %1650 = vmatpush1.msra.mxu0 0.0
        %1651 = vmatprep.subr.mxu0 0.0
        %1652 = vmatpush1.msra.mxu0 0.0
        %1653 = vmatprep.subr.mxu0 0.0
        %1654 = vmatpush1.msra.mxu0 0.0
        %1655 = vmatprep.subr.mxu0 0.0
        %1656 = vmatpush1.msra.mxu0 0.0
        %1657 = vmatprep.subr.mxu0 0.0
        %1658 = vmatpush1.msra.mxu0 0.0
        %1659 = vmatprep.subr.mxu0 0.0
        %1660 = vmatpush1.msra.mxu0 0.0
        %1661 = vmatprep.subr.mxu0 0.0
        %1662 = vmatpush1.msra.mxu0 0.0
        %1663 = vmatprep.subr.mxu0 0.0
        %1664 = vmatpush1.msra.mxu0 0.0
        %1665 = vmatprep.mubr.f32.mxu0 0.0
        %1666 = vmatmul.mubr.f32.gmra.mrb[0].mxu0 %v1596
        %v1667 = vpop.f32.mrb[0].mxu0
        %v1668 = vadd.f32 0.0, %v1667
        %v1669 = vpop.f32.mrb[0].mxu0
        %1670 = vmatprep.mubr.f32.mxu0 0.0
        %1671 = vmatmul.mubr.f32.gmra.mrb[0].mxu0 %v1599
        %v1672 = vpop.f32.mrb[0].mxu0
        %v1673 = vadd.f32 0.0, %v1672
        %v1674 = vpop.f32.mrb[0].mxu0
        %1675 = vdwg.mxu0
        %v1677 = vsel %vm920, %v1668, 0
        %v1680 = vsel %vm920, %v1673, 0
        %1682 = vmatprep.subr.mxu0 0.0
        %1683 = vmatpush1.msra.mxu0 %v912
        %1684 = vmatprep.subr.mxu0 0.0
        %1685 = vmatpush1.msra.mxu0 0.0
        %1686 = vmatprep.subr.mxu0 0.0
        %1687 = vmatpush1.msra.mxu0 0.0
        %1688 = vmatprep.subr.mxu0 0.0
        %1689 = vmatpush1.msra.mxu0 0.0
        %1690 = vmatprep.subr.mxu0 0.0
        %1691 = vmatpush1.msra.mxu0 0.0
        %1692 = vmatprep.subr.mxu0 0.0
        %1693 = vmatpush1.msra.mxu0 0.0
        %1694 = vmatprep.subr.mxu0 0.0
        %1695 = vmatpush1.msra.mxu0 0.0
        %1696 = vmatprep.subr.mxu0 0.0
        %1697 = vmatpush1.msra.mxu0 0.0
        %1698 = vmatprep.subr.mxu0 0.0
        %1699 = vmatpush1.msra.mxu0 0.0
        %1700 = vmatprep.subr.mxu0 0.0
        %1701 = vmatpush1.msra.mxu0 0.0
        %1702 = vmatprep.subr.mxu0 0.0
        %1703 = vmatpush1.msra.mxu0 0.0
        %1704 = vmatprep.subr.mxu0 0.0
        %1705 = vmatpush1.msra.mxu0 0.0
        %1706 = vmatprep.subr.mxu0 0.0
        %1707 = vmatpush1.msra.mxu0 0.0
        %1708 = vmatprep.subr.mxu0 0.0
        %1709 = vmatpush1.msra.mxu0 0.0
        %1710 = vmatprep.subr.mxu0 0.0
        %1711 = vmatpush1.msra.mxu0 0.0
        %1712 = vmatprep.subr.mxu0 0.0
        %1713 = vmatpush1.msra.mxu0 0.0
        %1714 = vmatprep.subr.mxu0 0.0
        %1715 = vmatpush1.msra.mxu0 0.0
        %1716 = vmatprep.subr.mxu0 0.0
        %1717 = vmatpush1.msra.mxu0 0.0
        %1718 = vmatprep.subr.mxu0 0.0
        %1719 = vmatpush1.msra.mxu0 0.0
        %1720 = vmatprep.subr.mxu0 0.0
        %1721 = vmatpush1.msra.mxu0 0.0
        %1722 = vmatprep.subr.mxu0 0.0
        %1723 = vmatpush1.msra.mxu0 0.0
        %1724 = vmatprep.subr.mxu0 0.0
        %1725 = vmatpush1.msra.mxu0 0.0
        %1726 = vmatprep.subr.mxu0 0.0
        %1727 = vmatpush1.msra.mxu0 0.0
        %1728 = vmatprep.subr.mxu0 0.0
        %1729 = vmatpush1.msra.mxu0 0.0
        %1730 = vmatprep.subr.mxu0 0.0
        %1731 = vmatpush1.msra.mxu0 0.0
        %1732 = vmatprep.subr.mxu0 0.0
        %1733 = vmatpush1.msra.mxu0 0.0
        %1734 = vmatprep.subr.mxu0 0.0
        %1735 = vmatpush1.msra.mxu0 0.0
        %1736 = vmatprep.subr.mxu0 0.0
        %1737 = vmatpush1.msra.mxu0 0.0
        %1738 = vmatprep.subr.mxu0 0.0
        %1739 = vmatpush1.msra.mxu0 0.0
        %1740 = vmatprep.subr.mxu0 0.0
        %1741 = vmatpush1.msra.mxu0 0.0
        %1742 = vmatprep.subr.mxu0 0.0
        %1743 = vmatpush1.msra.mxu0 0.0
        %1744 = vmatprep.subr.mxu0 0.0
        %1745 = vmatpush1.msra.mxu0 0.0
        %1746 = vmatprep.mubr.f32.mxu0 0.0
        %1747 = vmatmul.mubr.f32.gmra.mrb[0].mxu0 %v1677
        %v1748 = vpop.f32.mrb[0].mxu0
        %v1749 = vadd.f32 0.0, %v1748
        %v1750 = vpop.f32.mrb[0].mxu0
        %1751 = vmatprep.mubr.f32.mxu0 0.0
        %1752 = vmatmul.mubr.f32.gmra.mrb[0].mxu0 %v1680
        %v1753 = vpop.f32.mrb[0].mxu0
        %v1754 = vadd.f32 0.0, %v1753
        %v1755 = vpop.f32.mrb[0].mxu0
        %1756 = vdwg.mxu0
        %v1757 = vadd.f32 %v1468, %v1749
        %v1758 = vadd.f32 %v1473, %v1754
        %1759 = vrot.lane.b32.xlu0 %v902, 104
        %v1760 = vpop.permute.xlu0 %1759
        %1761 = vrot.lane.b32.xlu0 %v907, 104
        %v1762 = vpop.permute.xlu0 %1761
        %1763 = vrot.lane.b32.xlu0 %v902, 72
        %v1764 = vpop.permute.xlu0 %1763
        %1765 = vrot.lane.b32.xlu0 %v907, 72
        %v1766 = vpop.permute.xlu0 %1765
        %v1767 = vsel %vm920, %v1760, 0
        %v1769 = vsel %vm920, %v1762, 0
        %v1771 = vsel %vm920, %v1764, 0
        %v1773 = vsel %vm920, %v1766, 0
        %1775 = vmatprep.subr.mxu0 0.0
        %1776 = vmatpush1.xpose.msra.mxu0 %v1771
        %1777 = vmatprep.subr.mxu0 0.0
        %1778 = vmatpush1.xpose.msra.mxu0 %v1773
        %1779 = vmatprep.subr.mxu0 0.0
        %1780 = vmatpush1.xpose.msra.mxu0 0.0
        %1781 = vmatprep.subr.mxu0 0.0
        %1782 = vmatpush1.xpose.msra.mxu0 0.0
        %1783 = vmatprep.subr.mxu0 0.0
        %1784 = vmatpush1.xpose.msra.mxu0 0.0
        %1785 = vmatprep.subr.mxu0 0.0
        %1786 = vmatpush1.xpose.msra.mxu0 0.0
        %1787 = vmatprep.subr.mxu0 0.0
        %1788 = vmatpush1.xpose.msra.mxu0 0.0
        %1789 = vmatprep.subr.mxu0 0.0
        %1790 = vmatpush1.xpose.msra.mxu0 0.0
        %1791 = vmatprep.subr.mxu0 0.0
        %1792 = vmatpush1.xpose.msra.mxu0 0.0
        %1793 = vmatprep.subr.mxu0 0.0
        %1794 = vmatpush1.xpose.msra.mxu0 0.0
        %1795 = vmatprep.subr.mxu0 0.0
        %1796 = vmatpush1.xpose.msra.mxu0 0.0
        %1797 = vmatprep.subr.mxu0 0.0
        %1798 = vmatpush1.xpose.msra.mxu0 0.0
        %1799 = vmatprep.subr.mxu0 0.0
        %1800 = vmatpush1.xpose.msra.mxu0 0.0
        %1801 = vmatprep.subr.mxu0 0.0
        %1802 = vmatpush1.xpose.msra.mxu0 0.0
        %1803 = vmatprep.subr.mxu0 0.0
        %1804 = vmatpush1.xpose.msra.mxu0 0.0
        %1805 = vmatprep.subr.mxu0 0.0
        %1806 = vmatpush1.xpose.msra.mxu0 0.0
        %1807 = vmatprep.subr.mxu0 0.0
        %1808 = vmatpush1.xpose.msra.mxu0 0.0
        %1809 = vmatprep.subr.mxu0 0.0
        %1810 = vmatpush1.xpose.msra.mxu0 0.0
        %1811 = vmatprep.subr.mxu0 0.0
        %1812 = vmatpush1.xpose.msra.mxu0 0.0
        %1813 = vmatprep.subr.mxu0 0.0
        %1814 = vmatpush1.xpose.msra.mxu0 0.0
        %1815 = vmatprep.subr.mxu0 0.0
        %1816 = vmatpush1.xpose.msra.mxu0 0.0
        %1817 = vmatprep.subr.mxu0 0.0
        %1818 = vmatpush1.xpose.msra.mxu0 0.0
        %1819 = vmatprep.subr.mxu0 0.0
        %1820 = vmatpush1.xpose.msra.mxu0 0.0
        %1821 = vmatprep.subr.mxu0 0.0
        %1822 = vmatpush1.xpose.msra.mxu0 0.0
        %1823 = vmatprep.subr.mxu0 0.0
        %1824 = vmatpush1.xpose.msra.mxu0 0.0
        %1825 = vmatprep.subr.mxu0 0.0
        %1826 = vmatpush1.xpose.msra.mxu0 0.0
        %1827 = vmatprep.subr.mxu0 0.0
        %1828 = vmatpush1.xpose.msra.mxu0 0.0
        %1829 = vmatprep.subr.mxu0 0.0
        %1830 = vmatpush1.xpose.msra.mxu0 0.0
        %1831 = vmatprep.subr.mxu0 0.0
        %1832 = vmatpush1.xpose.msra.mxu0 0.0
        %1833 = vmatprep.subr.mxu0 0.0
        %1834 = vmatpush1.xpose.msra.mxu0 0.0
        %1835 = vmatprep.subr.mxu0 0.0
        %1836 = vmatpush1.xpose.msra.mxu0 0.0
        %1837 = vmatprep.subr.mxu0 0.0
        %1838 = vmatpush1.xpose.msra.mxu0 0.0
        %1839 = vmatprep.mubr.f32.mxu0 0.0
        %1840 = vmatmul.mubr.f32.gmra.mrb[0].mxu0 %v1767
        %v1841 = vpop.f32.mrb[0].mxu0
        %v1842 = vadd.f32 %v815, %v1841
        %v1843 = vpop.f32.mrb[0].mxu0
        %1844 = vmatprep.mubr.f32.mxu0 0.0
        %1845 = vmatmul.mubr.f32.gmra.mrb[0].mxu0 %v1769
        %v1846 = vpop.f32.mrb[0].mxu0
        %v1847 = vadd.f32 %v816, %v1846
        %v1848 = vpop.f32.mrb[0].mxu0
        %1849 = vdwg.mxu0
        %v1850 = vsel %vm1004, %v1842, -inf
        %1851 = vmax.xlane.f32.xlu0 %v1850
        %v1852 = vpop.xlane.xlu0 %1851
        %v1853 = vsel %vm1004, %v1847, -inf
        %1854 = vmax.xlane.f32.xlu0 %v1853
        %v1855 = vpop.xlane.xlu0 %1854
        %v1856 = vsub.f32 %v1842, %v1852
        %v1857 = vsub.f32 %v1847, %v1855
        %v1858 = vmul.f32 %v1856, 1.442695
        %v1859 = vpow.pop %v1858
        %v1860 = vmul.f32 %v1857, 1.442695
        %v1861 = vpow.pop %v1860
        %v1862 = vsel %vm1004, %v1859, 0.0
        %1863 = vadd.xlane.f32.xlu0 %v1862
        %v1864 = vpop.xlane.xlu0 %1863
        %v1865 = vsel %vm1004, %v1861, 0.0
        %1866 = vadd.xlane.f32.xlu0 %v1865
        %v1867 = vpop.xlane.xlu0 %1866
        %v1868 = vrcp.pop %v1864
        %v1869 = vmul.f32 %v1859, %v1868
        %v1870 = vrcp.pop %v1867
        %v1871 = vmul.f32 %v1861, %v1870
        %1872 = vrot.lane.b32.xlu0 %v902, 40
        %v1873 = vpop.permute.xlu0 %1872
        %1874 = vrot.lane.b32.xlu0 %v907, 40
        %v1875 = vpop.permute.xlu0 %1874
        %v1879 = vsel %vm1004, %v1869, 0
        %v1882 = vsel %vm1004, %v1871, 0
        %1884 = vmatprep.subr.mxu0 0.0
        %1885 = vmatpush1.msra.mxu0 %v1873
        %1886 = vmatprep.subr.mxu0 0.0
        %1887 = vmatpush1.msra.mxu0 %v1875
        %1888 = vmatprep.subr.mxu0 0.0
        %1889 = vmatpush1.msra.mxu0 0.0
        %1890 = vmatprep.subr.mxu0 0.0
        %1891 = vmatpush1.msra.mxu0 0.0
        %1892 = vmatprep.subr.mxu0 0.0
        %1893 = vmatpush1.msra.mxu0 0.0
        %1894 = vmatprep.subr.mxu0 0.0
        %1895 = vmatpush1.msra.mxu0 0.0
        %1896 = vmatprep.subr.mxu0 0.0
        %1897 = vmatpush1.msra.mxu0 0.0
        %1898 = vmatprep.subr.mxu0 0.0
        %1899 = vmatpush1.msra.mxu0 0.0
        %1900 = vmatprep.subr.mxu0 0.0
        %1901 = vmatpush1.msra.mxu0 0.0
        %1902 = vmatprep.subr.mxu0 0.0
        %1903 = vmatpush1.msra.mxu0 0.0
        %1904 = vmatprep.subr.mxu0 0.0
        %1905 = vmatpush1.msra.mxu0 0.0
        %1906 = vmatprep.subr.mxu0 0.0
        %1907 = vmatpush1.msra.mxu0 0.0
        %1908 = vmatprep.subr.mxu0 0.0
        %1909 = vmatpush1.msra.mxu0 0.0
        %1910 = vmatprep.subr.mxu0 0.0
        %1911 = vmatpush1.msra.mxu0 0.0
        %1912 = vmatprep.subr.mxu0 0.0
        %1913 = vmatpush1.msra.mxu0 0.0
        %1914 = vmatprep.subr.mxu0 0.0
        %1915 = vmatpush1.msra.mxu0 0.0
        %1916 = vmatprep.subr.mxu0 0.0
        %1917 = vmatpush1.msra.mxu0 0.0
        %1918 = vmatprep.subr.mxu0 0.0
        %1919 = vmatpush1.msra.mxu0 0.0
        %1920 = vmatprep.subr.mxu0 0.0
        %1921 = vmatpush1.msra.mxu0 0.0
        %1922 = vmatprep.subr.mxu0 0.0
        %1923 = vmatpush1.msra.mxu0 0.0
        %1924 = vmatprep.subr.mxu0 0.0
        %1925 = vmatpush1.msra.mxu0 0.0
        %1926 = vmatprep.subr.mxu0 0.0
        %1927 = vmatpush1.msra.mxu0 0.0
        %1928 = vmatprep.subr.mxu0 0.0
        %1929 = vmatpush1.msra.mxu0 0.0
        %1930 = vmatprep.subr.mxu0 0.0
        %1931 = vmatpush1.msra.mxu0 0.0
        %1932 = vmatprep.subr.mxu0 0.0
        %1933 = vmatpush1.msra.mxu0 0.0
        %1934 = vmatprep.subr.mxu0 0.0
        %1935 = vmatpush1.msra.mxu0 0.0
        %1936 = vmatprep.subr.mxu0 0.0
        %1937 = vmatpush1.msra.mxu0 0.0
        %1938 = vmatprep.subr.mxu0 0.0
        %1939 = vmatpush1.msra.mxu0 0.0
        %1940 = vmatprep.subr.mxu0 0.0
        %1941 = vmatpush1.msra.mxu0 0.0
        %1942 = vmatprep.subr.mxu0 0.0
        %1943 = vmatpush1.msra.mxu0 0.0
        %1944 = vmatprep.subr.mxu0 0.0
        %1945 = vmatpush1.msra.mxu0 0.0
        %1946 = vmatprep.subr.mxu0 0.0
        %1947 = vmatpush1.msra.mxu0 0.0
        %1948 = vmatprep.mubr.f32.mxu0 0.0
        %1949 = vmatmul.mubr.f32.gmra.mrb[0].mxu0 %v1879
        %v1950 = vpop.f32.mrb[0].mxu0
        %v1951 = vadd.f32 0.0, %v1950
        %v1952 = vpop.f32.mrb[0].mxu0
        %1953 = vmatprep.mubr.f32.mxu0 0.0
        %1954 = vmatmul.mubr.f32.gmra.mrb[0].mxu0 %v1882
        %v1955 = vpop.f32.mrb[0].mxu0
        %v1956 = vadd.f32 0.0, %v1955
        %v1957 = vpop.f32.mrb[0].mxu0
        %1958 = vdwg.mxu0
        %v1960 = vsel %vm920, %v1951, 0
        %v1963 = vsel %vm920, %v1956, 0
        %1965 = vmatprep.subr.mxu0 0.0
        %1966 = vmatpush1.msra.mxu0 %v913
        %1967 = vmatprep.subr.mxu0 0.0
        %1968 = vmatpush1.msra.mxu0 0.0
        %1969 = vmatprep.subr.mxu0 0.0
        %1970 = vmatpush1.msra.mxu0 0.0
        %1971 = vmatprep.subr.mxu0 0.0
        %1972 = vmatpush1.msra.mxu0 0.0
        %1973 = vmatprep.subr.mxu0 0.0
        %1974 = vmatpush1.msra.mxu0 0.0
        %1975 = vmatprep.subr.mxu0 0.0
        %1976 = vmatpush1.msra.mxu0 0.0
        %1977 = vmatprep.subr.mxu0 0.0
        %1978 = vmatpush1.msra.mxu0 0.0
        %1979 = vmatprep.subr.mxu0 0.0
        %1980 = vmatpush1.msra.mxu0 0.0
        %1981 = vmatprep.subr.mxu0 0.0
        %1982 = vmatpush1.msra.mxu0 0.0
        %1983 = vmatprep.subr.mxu0 0.0
        %1984 = vmatpush1.msra.mxu0 0.0
        %1985 = vmatprep.subr.mxu0 0.0
        %1986 = vmatpush1.msra.mxu0 0.0
        %1987 = vmatprep.subr.mxu0 0.0
        %1988 = vmatpush1.msra.mxu0 0.0
        %1989 = vmatprep.subr.mxu0 0.0
        %1990 = vmatpush1.msra.mxu0 0.0
        %1991 = vmatprep.subr.mxu0 0.0
        %1992 = vmatpush1.msra.mxu0 0.0
        %1993 = vmatprep.subr.mxu0 0.0
        %1994 = vmatpush1.msra.mxu0 0.0
        %1995 = vmatprep.subr.mxu0 0.0
        %1996 = vmatpush1.msra.mxu0 0.0
        %1997 = vmatprep.subr.mxu0 0.0
        %1998 = vmatpush1.msra.mxu0 0.0
        %1999 = vmatprep.subr.mxu0 0.0
        %2000 = vmatpush1.msra.mxu0 0.0
        %2001 = vmatprep.subr.mxu0 0.0
        %2002 = vmatpush1.msra.mxu0 0.0
        %2003 = vmatprep.subr.mxu0 0.0
        %2004 = vmatpush1.msra.mxu0 0.0
        %2005 = vmatprep.subr.mxu0 0.0
        %2006 = vmatpush1.msra.mxu0 0.0
        %2007 = vmatprep.subr.mxu0 0.0
        %2008 = vmatpush1.msra.mxu0 0.0
        %2009 = vmatprep.subr.mxu0 0.0
        %2010 = vmatpush1.msra.mxu0 0.0
        %2011 = vmatprep.subr.mxu0 0.0
        %2012 = vmatpush1.msra.mxu0 0.0
        %2013 = vmatprep.subr.mxu0 0.0
        %2014 = vmatpush1.msra.mxu0 0.0
        %2015 = vmatprep.subr.mxu0 0.0
        %2016 = vmatpush1.msra.mxu0 0.0
        %2017 = vmatprep.subr.mxu0 0.0
        %2018 = vmatpush1.msra.mxu0 0.0
        %2019 = vmatprep.subr.mxu0 0.0
        %2020 = vmatpush1.msra.mxu0 0.0
        %2021 = vmatprep.subr.mxu0 0.0
        %2022 = vmatpush1.msra.mxu0 0.0
        %2023 = vmatprep.subr.mxu0 0.0
        %2024 = vmatpush1.msra.mxu0 0.0
        %2025 = vmatprep.subr.mxu0 0.0
        %2026 = vmatpush1.msra.mxu0 0.0
        %2027 = vmatprep.subr.mxu0 0.0
        %2028 = vmatpush1.msra.mxu0 0.0
        %2029 = vmatprep.mubr.f32.mxu0 0.0
        %2030 = vmatmul.mubr.f32.gmra.mrb[0].mxu0 %v1960
        %v2031 = vpop.f32.mrb[0].mxu0
        %v2032 = vadd.f32 0.0, %v2031
        %v2033 = vpop.f32.mrb[0].mxu0
        %2034 = vmatprep.mubr.f32.mxu0 0.0
        %2035 = vmatmul.mubr.f32.gmra.mrb[0].mxu0 %v1963
        %v2036 = vpop.f32.mrb[0].mxu0
        %v2037 = vadd.f32 0.0, %v2036
        %v2038 = vpop.f32.mrb[0].mxu0
        %2039 = vdwg.mxu0
        %v2040 = vadd.f32 %v1757, %v2032
        %v2041 = vadd.f32 %v1758, %v2037
        %v2042 = vld [vmem:[%s659] sm:$0x1]
        %v2044 = vlaneseq
        %v2045 = vshrl.u32 %v2044, 7
        %v2046 = vsub.s32 0, %v2045
        %v2047 = vrot.slane %v2042, %v2046
        %v2049 = vadd.f32 %v2040, %v2047
        %v2050 = vadd.f32 %v2041, %v2047
        %v2051 = vadd.f32 %v2049, %v813
        %v2052 = vadd.f32 %v2050, %v814
        %v2053 = vld [vmem:[%s667] sm:$0x1]
        %v2054 = vld [vmem:[%s675] sm:$0x1]
        %v2055 = vsel %vm828, %v2051, 0.0
        %2056 = vadd.xlane.f32.xlu0 %v2055
        %v2057 = vpop.xlane.xlu0 %2056
        %v2058 = vsel %vm828, %v2052, 0.0
        %2059 = vadd.xlane.f32.xlu0 %v2058
        %v2060 = vpop.xlane.xlu0 %2059
        %v2061 = vrcp.pop 32.0
        %v2062 = vmul.f32 %v2057, %v2061
        %v2063 = vmul.f32 %v2060, %v2061
        %v2064 = vsub.f32 %v2051, %v2062
        %v2065 = vsub.f32 %v2052, %v2063
        %v2066 = vmul.f32 %v2064, %v2064
        %v2067 = vmul.f32 %v2065, %v2065
        %v2068 = vsel %vm828, %v2066, 0.0
        %2069 = vadd.xlane.f32.xlu0 %v2068
        %v2070 = vpop.xlane.xlu0 %2069
        %v2071 = vsel %vm828, %v2067, 0.0
        %2072 = vadd.xlane.f32.xlu0 %v2071
        %v2073 = vpop.xlane.xlu0 %2072
        %v2074 = vmul.f32 %v2070, %v2061
        %v2075 = vmul.f32 %v2073, %v2061
        %v2076 = vadd.f32 %v2074, 1e-12
        %v2077 = vadd.f32 %v2075, 1e-12
        %v2078 = vrsqrt.pop %v2076
        %v2079 = vrsqrt.pop %v2077
        %v2080 = vmul.f32 %v2064, %v2078
        %v2081 = vmul.f32 %v2065, %v2079
        %v2083 = vlaneseq
        %v2084 = vshrl.u32 %v2083, 7
        %v2085 = vsub.s32 0, %v2084
        %v2086 = vrot.slane %v2053, %v2085
        %v2088 = vmul.f32 %v2080, %v2086
        %v2089 = vmul.f32 %v2081, %v2086
        %v2091 = vlaneseq
        %v2092 = vshrl.u32 %v2091, 7
        %v2093 = vsub.s32 0, %v2092
        %v2094 = vrot.slane %v2054, %v2093
        %v2096 = vadd.f32 %v2088, %v2094
        %v2097 = vadd.f32 %v2089, %v2094
        %v2098 = vld [vmem:[%s789] sm:$0xff]
        %v2099 = vld [vmem:[%s789 + $0x8] sm:$0xff]
        %v2100 = vld [vmem:[%s789 + $0x10] sm:$0xff]
        %v2101 = vld [vmem:[%s789 + $0x18] sm:$0xff]
        %v2102 = vld [vmem:[%s683] sm:$0x1]
        %v2104 = vlaneseq
        %v2105 = vshrl.u32 %v2104, 7
        %v2106 = vsub.s32 0, %v2105
        %v2107 = vrot.slane %v2102, %v2106
        %v2110 = vsel %vm828, %v2096, 0
        %v2113 = vsel %vm828, %v2097, 0
        %2115 = vmatprep.subr.mxu0 0.0
        %2116 = vmatpush1.msra.mxu0 %v2098
        %2117 = vmatprep.subr.mxu0 0.0
        %2118 = vmatpush1.msra.mxu0 %v2099
        %2119 = vmatprep.subr.mxu0 0.0
        %2120 = vmatpush1.msra.mxu0 %v2100
        %2121 = vmatprep.subr.mxu0 0.0
        %2122 = vmatpush1.msra.mxu0 %v2101
        %2123 = vmatprep.subr.mxu0 0.0
        %2124 = vmatpush1.msra.mxu0 0.0
        %2125 = vmatprep.subr.mxu0 0.0
        %2126 = vmatpush1.msra.mxu0 0.0
        %2127 = vmatprep.subr.mxu0 0.0
        %2128 = vmatpush1.msra.mxu0 0.0
        %2129 = vmatprep.subr.mxu0 0.0
        %2130 = vmatpush1.msra.mxu0 0.0
        %2131 = vmatprep.subr.mxu0 0.0
        %2132 = vmatpush1.msra.mxu0 0.0
        %2133 = vmatprep.subr.mxu0 0.0
        %2134 = vmatpush1.msra.mxu0 0.0
        %2135 = vmatprep.subr.mxu0 0.0
        %2136 = vmatpush1.msra.mxu0 0.0
        %2137 = vmatprep.subr.mxu0 0.0
        %2138 = vmatpush1.msra.mxu0 0.0
        %2139 = vmatprep.subr.mxu0 0.0
        %2140 = vmatpush1.msra.mxu0 0.0
        %2141 = vmatprep.subr.mxu0 0.0
        %2142 = vmatpush1.msra.mxu0 0.0
        %2143 = vmatprep.subr.mxu0 0.0
        %2144 = vmatpush1.msra.mxu0 0.0
        %2145 = vmatprep.subr.mxu0 0.0
        %2146 = vmatpush1.msra.mxu0 0.0
        %2147 = vmatprep.subr.mxu0 0.0
        %2148 = vmatpush1.msra.mxu0 0.0
        %2149 = vmatprep.subr.mxu0 0.0
        %2150 = vmatpush1.msra.mxu0 0.0
        %2151 = vmatprep.subr.mxu0 0.0
        %2152 = vmatpush1.msra.mxu0 0.0
        %2153 = vmatprep.subr.mxu0 0.0
        %2154 = vmatpush1.msra.mxu0 0.0
        %2155 = vmatprep.subr.mxu0 0.0
        %2156 = vmatpush1.msra.mxu0 0.0
        %2157 = vmatprep.subr.mxu0 0.0
        %2158 = vmatpush1.msra.mxu0 0.0
        %2159 = vmatprep.subr.mxu0 0.0
        %2160 = vmatpush1.msra.mxu0 0.0
        %2161 = vmatprep.subr.mxu0 0.0
        %2162 = vmatpush1.msra.mxu0 0.0
        %2163 = vmatprep.subr.mxu0 0.0
        %2164 = vmatpush1.msra.mxu0 0.0
        %2165 = vmatprep.subr.mxu0 0.0
        %2166 = vmatpush1.msra.mxu0 0.0
        %2167 = vmatprep.subr.mxu0 0.0
        %2168 = vmatpush1.msra.mxu0 0.0
        %2169 = vmatprep.subr.mxu0 0.0
        %2170 = vmatpush1.msra.mxu0 0.0
        %2171 = vmatprep.subr.mxu0 0.0
        %2172 = vmatpush1.msra.mxu0 0.0
        %2173 = vmatprep.subr.mxu0 0.0
        %2174 = vmatpush1.msra.mxu0 0.0
        %2175 = vmatprep.subr.mxu0 0.0
        %2176 = vmatpush1.msra.mxu0 0.0
        %2177 = vmatprep.subr.mxu0 0.0
        %2178 = vmatpush1.msra.mxu0 0.0
        %2179 = vmatprep.mubr.f32.mxu0 0.0
        %2180 = vmatmul.mubr.f32.gmra.mrb[0].mxu0 %v2110
        %v2181 = vpop.f32.mrb[0].mxu0
        %v2182 = vadd.f32 %v2107, %v2181
        %v2183 = vpop.f32.mrb[0].mxu0
        %2184 = vmatprep.mubr.f32.mxu0 0.0
        %2185 = vmatmul.mubr.f32.gmra.mrb[0].mxu0 %v2113
        %v2186 = vpop.f32.mrb[0].mxu0
        %v2187 = vadd.f32 %v2107, %v2186
        %v2188 = vpop.f32.mrb[0].mxu0
        %2189 = vdwg.mxu0
        %v2190 = vmul.f32 %v2182, 0.5
        %v2191 = vmul.f32 %v2187, 0.5
        %v2192 = vmul.f32 %v2182, 0.70710677
        %v2193 = vmul.f32 %v2187, 0.70710677
        %v2194 = verf.f32.pop %v2192
        %v2195 = verf.f32.pop %v2193
        %v2196 = vadd.f32 %v2194, 1.0
        %v2197 = vadd.f32 %v2195, 1.0
        %v2198 = vmul.f32 %v2190, %v2196
        %v2199 = vmul.f32 %v2191, %v2197
        %v2200 = vld [vmem:[%s794] sm:$0xff]
        %v2201 = vld [vmem:[%s794 + $0x8] sm:$0xff]
        %v2202 = vld [vmem:[%s794 + $0x10] sm:$0xff]
        %v2203 = vld [vmem:[%s794 + $0x18] sm:$0xff]
        %v2204 = vld [vmem:[%s794 + $0x20] sm:$0xff]
        %v2205 = vld [vmem:[%s794 + $0x28] sm:$0xff]
        %v2206 = vld [vmem:[%s794 + $0x30] sm:$0xff]
        %v2207 = vld [vmem:[%s794 + $0x38] sm:$0xff]
        %v2208 = vld [vmem:[%s797] sm:$0x1]
        %v2210 = vlaneseq
        %v2211 = vshrl.u32 %v2210, 7
        %v2212 = vsub.s32 0, %v2211
        %v2213 = vrot.slane %v2208, %v2212
        %vm2215 = vcmask 523264
        %v2217 = vsel %vm2215, %v2198, 0
        %v2220 = vsel %vm2215, %v2199, 0
        %2222 = vmatprep.subr.mxu0 0.0
        %2223 = vmatpush1.msra.mxu0 %v2200
        %2224 = vmatprep.subr.mxu0 0.0
        %2225 = vmatpush1.msra.mxu0 %v2201
        %2226 = vmatprep.subr.mxu0 0.0
        %2227 = vmatpush1.msra.mxu0 %v2202
        %2228 = vmatprep.subr.mxu0 0.0
        %2229 = vmatpush1.msra.mxu0 %v2203
        %2230 = vmatprep.subr.mxu0 0.0
        %2231 = vmatpush1.msra.mxu0 %v2204
        %2232 = vmatprep.subr.mxu0 0.0
        %2233 = vmatpush1.msra.mxu0 %v2205
        %2234 = vmatprep.subr.mxu0 0.0
        %2235 = vmatpush1.msra.mxu0 %v2206
        %2236 = vmatprep.subr.mxu0 0.0
        %2237 = vmatpush1.msra.mxu0 %v2207
        %2238 = vmatprep.subr.mxu0 0.0
        %2239 = vmatpush1.msra.mxu0 0.0
        %2240 = vmatprep.subr.mxu0 0.0
        %2241 = vmatpush1.msra.mxu0 0.0
        %2242 = vmatprep.subr.mxu0 0.0
        %2243 = vmatpush1.msra.mxu0 0.0
        %2244 = vmatprep.subr.mxu0 0.0
        %2245 = vmatpush1.msra.mxu0 0.0
        %2246 = vmatprep.subr.mxu0 0.0
        %2247 = vmatpush1.msra.mxu0 0.0
        %2248 = vmatprep.subr.mxu0 0.0
        %2249 = vmatpush1.msra.mxu0 0.0
        %2250 = vmatprep.subr.mxu0 0.0
        %2251 = vmatpush1.msra.mxu0 0.0
        %2252 = vmatprep.subr.mxu0 0.0
        %2253 = vmatpush1.msra.mxu0 0.0
        %2254 = vmatprep.subr.mxu0 0.0
        %2255 = vmatpush1.msra.mxu0 0.0
        %2256 = vmatprep.subr.mxu0 0.0
        %2257 = vmatpush1.msra.mxu0 0.0
        %2258 = vmatprep.subr.mxu0 0.0
        %2259 = vmatpush1.msra.mxu0 0.0
        %2260 = vmatprep.subr.mxu0 0.0
        %2261 = vmatpush1.msra.mxu0 0.0
        %2262 = vmatprep.subr.mxu0 0.0
        %2263 = vmatpush1.msra.mxu0 0.0
        %2264 = vmatprep.subr.mxu0 0.0
        %2265 = vmatpush1.msra.mxu0 0.0
        %2266 = vmatprep.subr.mxu0 0.0
        %2267 = vmatpush1.msra.mxu0 0.0
        %2268 = vmatprep.subr.mxu0 0.0
        %2269 = vmatpush1.msra.mxu0 0.0
        %2270 = vmatprep.subr.mxu0 0.0
        %2271 = vmatpush1.msra.mxu0 0.0
        %2272 = vmatprep.subr.mxu0 0.0
        %2273 = vmatpush1.msra.mxu0 0.0
        %2274 = vmatprep.subr.mxu0 0.0
        %2275 = vmatpush1.msra.mxu0 0.0
        %2276 = vmatprep.subr.mxu0 0.0
        %2277 = vmatpush1.msra.mxu0 0.0
        %2278 = vmatprep.subr.mxu0 0.0
        %2279 = vmatpush1.msra.mxu0 0.0
        %2280 = vmatprep.subr.mxu0 0.0
        %2281 = vmatpush1.msra.mxu0 0.0
        %2282 = vmatprep.subr.mxu0 0.0
        %2283 = vmatpush1.msra.mxu0 0.0
        %2284 = vmatprep.subr.mxu0 0.0
        %2285 = vmatpush1.msra.mxu0 0.0
        %2286 = vmatprep.mubr.f32.mxu0 0.0
        %2287 = vmatmul.mubr.f32.gmra.mrb[0].mxu0 %v2217
        %v2288 = vpop.f32.mrb[0].mxu0
        %v2289 = vadd.f32 %v2213, %v2288
        %v2290 = vpop.f32.mrb[0].mxu0
        %2291 = vmatprep.mubr.f32.mxu0 0.0
        %2292 = vmatmul.mubr.f32.gmra.mrb[0].mxu0 %v2220
        %v2293 = vpop.f32.mrb[0].mxu0
        %v2294 = vadd.f32 %v2213, %v2293
        %v2295 = vpop.f32.mrb[0].mxu0
        %2296 = vdwg.mxu0
        %v2297 = vadd.f32 %v2289, %v2096
        %v2298 = vadd.f32 %v2294, %v2097
        %v2299 = vld [vmem:[%s800] sm:$0x1]
        %v2300 = vld [vmem:[%s803] sm:$0x1]
        %v2301 = vsel %vm828, %v2297, 0.0
        %2302 = vadd.xlane.f32.xlu0 %v2301
        %v2303 = vpop.xlane.xlu0 %2302
        %v2304 = vsel %vm828, %v2298, 0.0
        %2305 = vadd.xlane.f32.xlu0 %v2304
        %v2306 = vpop.xlane.xlu0 %2305
        %v2307 = vmul.f32 %v2303, %v2061
        %v2308 = vmul.f32 %v2306, %v2061
        %v2309 = vsub.f32 %v2297, %v2307
        %v2310 = vsub.f32 %v2298, %v2308
        %v2311 = vmul.f32 %v2309, %v2309
        %v2312 = vmul.f32 %v2310, %v2310
        %v2313 = vsel %vm828, %v2311, 0.0
        %2314 = vadd.xlane.f32.xlu0 %v2313
        %v2315 = vpop.xlane.xlu0 %2314
        %v2316 = vsel %vm828, %v2312, 0.0
        %2317 = vadd.xlane.f32.xlu0 %v2316
        %v2318 = vpop.xlane.xlu0 %2317
        %v2319 = vmul.f32 %v2315, %v2061
        %v2320 = vmul.f32 %v2318, %v2061
        %v2321 = vadd.f32 %v2319, 1e-12
        %v2322 = vadd.f32 %v2320, 1e-12
        %v2323 = vrsqrt.pop %v2321
        %v2324 = vrsqrt.pop %v2322
        %v2325 = vmul.f32 %v2309, %v2323
        %v2326 = vmul.f32 %v2310, %v2324
        %v2328 = vlaneseq
        %v2329 = vshrl.u32 %v2328, 7
        %v2330 = vsub.s32 0, %v2329
        %v2331 = vrot.slane %v2299, %v2330
        %v2333 = vmul.f32 %v2325, %v2331
        %v2334 = vmul.f32 %v2326, %v2331
        %v2336 = vlaneseq
        %v2337 = vshrl.u32 %v2336, 7
        %v2338 = vsub.s32 0, %v2337
        %v2339 = vrot.slane %v2300, %v2338
        %v2341 = vadd.f32 %v2333, %v2339
        %v2342 = vadd.f32 %v2334, %v2339
        %2343 = vst.msk [vmem:[#allocation2] sm:$0xff] %vm828, %v2341
        %2344 = vst.msk [vmem:[#allocation2 + $0x8] sm:$0xff] %vm828, %v2342
        %p2345 = scmp.eq.s32.totalorder %s33, 1
        // Predicated region
        $region113: #{tpu_custom_call.1} parent=83 // pred_check
          %p2346 = pneg %p2345
        $region114: #{tpu_custom_call.1} parent=83 // pred_check_branch
          %2348 = sbr.rel (%p2346) target = $region116
        $region115: #{tpu_custom_call.1} parent=83 // pred_region
          %2349 = vst.msk [vmem:[#allocation12] sm:$0xff] %vm828, %v2341
          %2350 = vst.msk [vmem:[#allocation12 + $0x8] sm:$0xff] %vm828, %v2342
          %v2351 = vlaneseq
          %v2352 = vshrl.u32 %v2351, 7
          %v2353 = vlaneseq
          %v2354 = vand.u32 %v2353, 127
          %v2355 = vmul.u32 %v2352, 8
          %vm2356 = vcmp.eq.s32.totalorder %v2354, %v2355
          %v2357 = vsel %vm2356, 1, 0
          %v2358 = vcvt.s32.f32 %v2357
          %v2360 = vsel %vm1004, %v2358, 0
          %2362 = vmatprep.subr.mxu0 0.0
          %2363 = vmatpush1.msra.mxu0 %v2341
          %2364 = vmatprep.subr.mxu0 0.0
          %2365 = vmatpush1.msra.mxu0 %v2342
          %2366 = vmatprep.subr.mxu0 0.0
          %2367 = vmatpush1.msra.mxu0 0.0
          %2368 = vmatprep.subr.mxu0 0.0
          %2369 = vmatpush1.msra.mxu0 0.0
          %2370 = vmatprep.subr.mxu0 0.0
          %2371 = vmatpush1.msra.mxu0 0.0
          %2372 = vmatprep.subr.mxu0 0.0
          %2373 = vmatpush1.msra.mxu0 0.0
          %2374 = vmatprep.subr.mxu0 0.0
          %2375 = vmatpush1.msra.mxu0 0.0
          %2376 = vmatprep.subr.mxu0 0.0
          %2377 = vmatpush1.msra.mxu0 0.0
          %2378 = vmatprep.subr.mxu0 0.0
          %2379 = vmatpush1.msra.mxu0 0.0
          %2380 = vmatprep.subr.mxu0 0.0
          %2381 = vmatpush1.msra.mxu0 0.0
          %2382 = vmatprep.subr.mxu0 0.0
          %2383 = vmatpush1.msra.mxu0 0.0
          %2384 = vmatprep.subr.mxu0 0.0
          %2385 = vmatpush1.msra.mxu0 0.0
          %2386 = vmatprep.subr.mxu0 0.0
          %2387 = vmatpush1.msra.mxu0 0.0
          %2388 = vmatprep.subr.mxu0 0.0
          %2389 = vmatpush1.msra.mxu0 0.0
          %2390 = vmatprep.subr.mxu0 0.0
          %2391 = vmatpush1.msra.mxu0 0.0
          %2392 = vmatprep.subr.mxu0 0.0
          %2393 = vmatpush1.msra.mxu0 0.0
          %2394 = vmatprep.subr.mxu0 0.0
          %2395 = vmatpush1.msra.mxu0 0.0
          %2396 = vmatprep.subr.mxu0 0.0
          %2397 = vmatpush1.msra.mxu0 0.0
          %2398 = vmatprep.subr.mxu0 0.0
          %2399 = vmatpush1.msra.mxu0 0.0
          %2400 = vmatprep.subr.mxu0 0.0
          %2401 = vmatpush1.msra.mxu0 0.0
          %2402 = vmatprep.subr.mxu0 0.0
          %2403 = vmatpush1.msra.mxu0 0.0
          %2404 = vmatprep.subr.mxu0 0.0
          %2405 = vmatpush1.msra.mxu0 0.0
          %2406 = vmatprep.subr.mxu0 0.0
          %2407 = vmatpush1.msra.mxu0 0.0
          %2408 = vmatprep.subr.mxu0 0.0
          %2409 = vmatpush1.msra.mxu0 0.0
          %2410 = vmatprep.subr.mxu0 0.0
          %2411 = vmatpush1.msra.mxu0 0.0
          %2412 = vmatprep.subr.mxu0 0.0
          %2413 = vmatpush1.msra.mxu0 0.0
          %2414 = vmatprep.subr.mxu0 0.0
          %2415 = vmatpush1.msra.mxu0 0.0
          %2416 = vmatprep.subr.mxu0 0.0
          %2417 = vmatpush1.msra.mxu0 0.0
          %2418 = vmatprep.subr.mxu0 0.0
          %2419 = vmatpush1.msra.mxu0 0.0
          %2420 = vmatprep.subr.mxu0 0.0
          %2421 = vmatpush1.msra.mxu0 0.0
          %2422 = vmatprep.subr.mxu0 0.0
          %2423 = vmatpush1.msra.mxu0 0.0
          %2424 = vmatprep.subr.mxu0 0.0
          %2425 = vmatpush1.msra.mxu0 0.0
          %2426 = vmatprep.mubr.f32.mxu0 0.0
          %2427 = vmatmul.mubr.f32.gmra.mrb[0].mxu0 %v2360
          %v2428 = vpop.f32.mrb[0].mxu0
          %v2429 = vadd.f32 0.0, %v2428
          %v2430 = vpop.f32.mrb[0].mxu0
          %2431 = vdwg.mxu0
          %v2432 = vld [vmem:[%s14] sm:$0xff]
          %v2433 = vld [vmem:[%s14 + $0x8] sm:$0xff]
          %v2434 = vld [vmem:[%s14 + $0x10] sm:$0xff]
          %v2435 = vld [vmem:[%s14 + $0x18] sm:$0xff]
          %v2436 = vld [vmem:[%s15] sm:$0x1]
          %v2438 = vlaneseq
          %v2439 = vshrl.u32 %v2438, 7
          %v2440 = vsub.s32 0, %v2439
          %v2441 = vrot.slane %v2436, %v2440
          %v2444 = vsel %vm828, %v2429, 0
          %2446 = vmatprep.subr.mxu0 0.0
          %2447 = vmatpush1.msra.mxu0 %v2432
          %2448 = vmatprep.subr.mxu0 0.0
          %2449 = vmatpush1.msra.mxu0 %v2433
          %2450 = vmatprep.subr.mxu0 0.0
          %2451 = vmatpush1.msra.mxu0 %v2434
          %2452 = vmatprep.subr.mxu0 0.0
          %2453 = vmatpush1.msra.mxu0 %v2435
          %2454 = vmatprep.subr.mxu0 0.0
          %2455 = vmatpush1.msra.mxu0 0.0
          %2456 = vmatprep.subr.mxu0 0.0
          %2457 = vmatpush1.msra.mxu0 0.0
          %2458 = vmatprep.subr.mxu0 0.0
          %2459 = vmatpush1.msra.mxu0 0.0
          %2460 = vmatprep.subr.mxu0 0.0
          %2461 = vmatpush1.msra.mxu0 0.0
          %2462 = vmatprep.subr.mxu0 0.0
          %2463 = vmatpush1.msra.mxu0 0.0
          %2464 = vmatprep.subr.mxu0 0.0
          %2465 = vmatpush1.msra.mxu0 0.0
          %2466 = vmatprep.subr.mxu0 0.0
          %2467 = vmatpush1.msra.mxu0 0.0
          %2468 = vmatprep.subr.mxu0 0.0
          %2469 = vmatpush1.msra.mxu0 0.0
          %2470 = vmatprep.subr.mxu0 0.0
          %2471 = vmatpush1.msra.mxu0 0.0
          %2472 = vmatprep.subr.mxu0 0.0
          %2473 = vmatpush1.msra.mxu0 0.0
          %2474 = vmatprep.subr.mxu0 0.0
          %2475 = vmatpush1.msra.mxu0 0.0
          %2476 = vmatprep.subr.mxu0 0.0
          %2477 = vmatpush1.msra.mxu0 0.0
          %2478 = vmatprep.subr.mxu0 0.0
          %2479 = vmatpush1.msra.mxu0 0.0
          %2480 = vmatprep.subr.mxu0 0.0
          %2481 = vmatpush1.msra.mxu0 0.0
          %2482 = vmatprep.subr.mxu0 0.0
          %2483 = vmatpush1.msra.mxu0 0.0
          %2484 = vmatprep.subr.mxu0 0.0
          %2485 = vmatpush1.msra.mxu0 0.0
          %2486 = vmatprep.subr.mxu0 0.0
          %2487 = vmatpush1.msra.mxu0 0.0
          %2488 = vmatprep.subr.mxu0 0.0
          %2489 = vmatpush1.msra.mxu0 0.0
          %2490 = vmatprep.subr.mxu0 0.0
          %2491 = vmatpush1.msra.mxu0 0.0
          %2492 = vmatprep.subr.mxu0 0.0
          %2493 = vmatpush1.msra.mxu0 0.0
          %2494 = vmatprep.subr.mxu0 0.0
          %2495 = vmatpush1.msra.mxu0 0.0
          %2496 = vmatprep.subr.mxu0 0.0
          %2497 = vmatpush1.msra.mxu0 0.0
          %2498 = vmatprep.subr.mxu0 0.0
          %2499 = vmatpush1.msra.mxu0 0.0
          %2500 = vmatprep.subr.mxu0 0.0
          %2501 = vmatpush1.msra.mxu0 0.0
          %2502 = vmatprep.subr.mxu0 0.0
          %2503 = vmatpush1.msra.mxu0 0.0
          %2504 = vmatprep.subr.mxu0 0.0
          %2505 = vmatpush1.msra.mxu0 0.0
          %2506 = vmatprep.subr.mxu0 0.0
          %2507 = vmatpush1.msra.mxu0 0.0
          %2508 = vmatprep.subr.mxu0 0.0
          %2509 = vmatpush1.msra.mxu0 0.0
          %2510 = vmatprep.mubr.f32.mxu0 0.0
          %2511 = vmatmul.mubr.f32.gmra.mrb[0].mxu0 %v2444
          %v2512 = vpop.f32.mrb[0].mxu0
          %v2513 = vadd.f32 %v2441, %v2512
          %v2514 = vpop.f32.mrb[0].mxu0
          %2515 = vdwg.mxu0
          %v2516 = vtanh.pop %v2513
          %vm2517 = vcmask 254976
          %2518 = vst.msk [vmem:[#allocation13] sm:$0x3] %vm2517, %v2516
        $region116: #{tpu_custom_call.1} parent=83 // pred_fallthru
          _
        // Predicated region
        $region117: #{tpu_custom_call.1} parent=83 // pred_check
          %p2519 = pneg %p442
        $region118: #{tpu_custom_call.1} parent=83 // pred_check_branch
          %2521 = sbr.rel (%p2519) target = $region120
        $region119: #{tpu_custom_call.1} parent=83 // pred_region
          %s2523 = ssub.s32 256, 256
          %2524 = vsyncadd [#allocation5], %s2523
          %s2525 = sshll.u32 [#allocation12], 4
          %s2526 = int_to_ptr.vmem [resolvable:$true] %s2525
          %2531 = dma.vmem_to_hbm [thread:$0]  %s2526, 256, %s16, [#allocation5], 128, 128, 8
        $region120: #{tpu_custom_call.1} parent=83 // pred_fallthru
          _
        // Predicated region
        $region121: #{tpu_custom_call.1} parent=83 // pred_check
          %p2532 = pneg %p463
        $region122: #{tpu_custom_call.1} parent=83 // pred_check_branch
          %2534 = sbr.rel (%p2532) target = $region124
        $region123: #{tpu_custom_call.1} parent=83 // pred_region
          %s2536 = ssub.s32 32, 32
          %2537 = vsyncadd [#allocation14], %s2536
          %s2539 = sshll.u32 [#allocation13], 4
          %s2540 = int_to_ptr.vmem [resolvable:$true] %s2539
          %2542 = dma.vmem_to_hbm [thread:$0]  %s2540, 32, %s17, [#allocation14]
        $region124: #{tpu_custom_call.1} parent=83 // pred_fallthru
          _
        // Predicated region
        $region125: #{tpu_custom_call.1} parent=83 // pred_check
          %p2543 = pneg %p442
        $region126: #{tpu_custom_call.1} parent=83 // pred_check_branch
          %2545 = sbr.rel (%p2543) target = $region128
        $region127: #{tpu_custom_call.1} parent=83 // pred_region
          %2546 = dma.done [#allocation5], 256
        $region128: #{tpu_custom_call.1} parent=83 // pred_fallthru
          _
        // Predicated region
        $region129: #{tpu_custom_call.1} parent=83 // pred_check
          %p2547 = pneg %p463
        $region130: #{tpu_custom_call.1} parent=83 // pred_check_branch
          %2549 = sbr.rel (%p2547) target = $region132
        $region131: #{tpu_custom_call.1} parent=83 // pred_region
          %2550 = dma.done [#allocation14], 32
        $region132: #{tpu_custom_call.1} parent=83 // pred_fallthru
          _
      $region84: #{tpu_custom_call.1} parent=5 // pred_fallthru
        _
      %p2551 = scmp.le.s32.totalorder 2, %s28
      // Predicated region
      $region133: #{tpu_custom_call.1} parent=5 // pred_check
        %p2552 = pneg %p2551
      $region134: #{tpu_custom_call.1} parent=5 // pred_check_branch
        %2554 = sbr.rel (%p2552) target = $region136
      $region135: #{tpu_custom_call.1} parent=5 // pred_region
        %s2555 = ssub.s32 %s28, 2
      $region136: #{tpu_custom_call.1} parent=5 // pred_fallthru
        _
    $region6: #{tpu_custom_call.1} parent=1 // loop_footer
      %s32 = sadd.s32 1, %s28
    $region7: #{tpu_custom_call.1} parent=1 // loop_footer_branch
      %27 = sbr.rel target = $region3
    $region8: #{tpu_custom_call.1} parent=1 // loop_exit
      _
    %2556 = vsyncpa [#allocation4], 1
    %s2557 = scalar_lea.sflag [#allocation4], 1
    %2558 = vsyncpa %s2557, 1
    %2559 = vsyncpa [#allocation7], 1
    %2560 = vsyncpa [#allocation5], 1
    %s2561 = scalar_lea.sflag [#allocation5], 1
    %2562 = vsyncpa %s2561, 1
    %2563 = vsyncpa [#allocation14], 1

</llo_original>
